<compile_context>
chip_gen: v6e
topology: v6e:2x2x1
jax: 0.10.0
libtpu: 0.0.40
codegen_flags: <defaults>
</compile_context>

<pallas_src>
import functools

import jax
import jax.numpy as jnp
from jax.experimental import pallas as pl
from jax.experimental.pallas import tpu as pltpu

KSIZE = 4
STRIDE = 2
PAD = 1
EPS = 1e-5
LANE = 128

VMEM_LIMIT_BYTES = 48 * 1024 * 1024       # safe on v5e/v6e (128 MiB) and v7x (64 MiB)
TILE_BUDGET_BYTES = 6 * 1024 * 1024       # (tm, K) bf16 patch block budget (double-buffered)
FUSED_BN_VMEM_BUDGET = 24 * 1024 * 1024   # budget for the fused single-call BN path


def _round_up(x, m):
    return (x + m - 1) // m * m


# ----------------------------------------------------------------------------
# Pallas kernels
# ----------------------------------------------------------------------------
def _apply_act(y, act):
    if act == "leaky":
        return jnp.where(y >= 0, y, 0.2 * y)
    if act == "sigmoid":
        # exact sigmoid (approx reciprocal could exceed 1.0 by ~1e-3)
        return 1.0 / (1.0 + jnp.exp(-y))
    return y


def _make_gemm_act_kernel(act):
    """GEMM (bf16 in, fp32 accumulate on the MXU) + fused activation."""

    def kernel(p_ref, w_ref, o_ref):
        y = jnp.dot(p_ref[...], w_ref[...], preferred_element_type=jnp.float32)
        o_ref[...] = _apply_act(y, act).astype(o_ref.dtype)

    return kernel


def _make_fused_bn_kernel(m_real, act):
    """Single-call Conv-GEMM + training-mode BatchNorm + activation.

    Grid axis ('arbitrary') walks row tiles; each step writes its fp32 GEMM
    result into a resident VMEM scratch.  The last step computes centered
    batch statistics over the whole (resident) activation, normalizes, applies
    the activation and writes the resident lane-dense output once.
    """
    inv_m = 1.0 / float(m_real)

    def kernel(p_ref, w_ref, o_ref, y_ref):
        i = pl.program_id(0)
        nt = pl.num_programs(0)
        tm = p_ref.shape[0]

        y = jnp.dot(p_ref[...], w_ref[...], preferred_element_type=jnp.float32)
        row0 = pl.multiple_of(i * tm, 8)
        y_ref[pl.ds(row0, tm), :] = y

        @pl.when(i == nt - 1)
        def _():
            y_all = y_ref[...]                                   # (Mp, C) fp32
            mp = y_all.shape[0]
            mean = jnp.sum(y_all, axis=0, keepdims=True) * inv_m  # (1, C)
            d = y_all - mean
            ssq = jnp.sum(d * d, axis=0, keepdims=True)
            if mp != m_real:
                # zero-padded rows contribute exactly mean^2 each -> remove.
                ssq = ssq - float(mp - m_real) * (mean * mean)
            var = jnp.maximum(ssq * inv_m, 0.0)
            scale = jax.lax.rsqrt(var + EPS)
            o_ref[...] = _apply_act(d * scale, act).astype(o_ref.dtype)

    return kernel


def _gemm_stats_kernel(p_ref, w_ref, y_ref, s_ref, q_ref):
    """Fallback pass 1: GEMM + resident per-channel sum / sum-of-squares.

    s_ref / q_ref are (8, C) resident accumulators (constant output block
    index across the 'arbitrary' grid axis); all 8 rows hold the same running
    total so the host just reads row 0.
    """
    i = pl.program_id(0)

    @pl.when(i == 0)
    def _():
        s_ref[...] = jnp.zeros_like(s_ref)
        q_ref[...] = jnp.zeros_like(q_ref)

    y = jnp.dot(p_ref[...], w_ref[...], preferred_element_type=jnp.float32)
    y_ref[...] = y.astype(y_ref.dtype)
    c = y.shape[-1]
    cs = jnp.sum(y, axis=0, keepdims=True)
    cq = jnp.sum(y * y, axis=0, keepdims=True)
    s_ref[...] += jnp.broadcast_to(cs, (8, c))
    q_ref[...] += jnp.broadcast_to(cq, (8, c))


def _make_norm_act_kernel(act):
    """Fallback pass 2: per-channel scale/shift (BN folded) + activation."""

    def kernel(y_ref, scale_ref, shift_ref, o_ref):
        y = y_ref[...].astype(jnp.float32)
        yn = y * scale_ref[...] + shift_ref[...]
        o_ref[...] = _apply_act(yn, act).astype(o_ref.dtype)

    return kernel


# ----------------------------------------------------------------------------
# Pallas wrappers
# ----------------------------------------------------------------------------
def _pick_tm(m, k, min_tiles=1):
    """Largest row tile whose (tm, K) bf16 block fits the tile budget.

    min_tiles>1 additionally caps the tile so the grid has at least that many
    steps (keeps the second TensorCore busy on v7x for 'parallel' grids)."""
    m8 = _round_up(m, 8)
    cap = TILE_BUDGET_BYTES // max(2 * k, 1)
    cap = max(8, min(4096, cap - cap % 8))
    if min_tiles > 1:
        cap = min(cap, max(8, _round_up(-(-m8 // min_tiles), 8)))
    return min(cap, m8)


def _compiler_params(semantics):
    return pltpu.CompilerParams(
        dimension_semantics=semantics,
        vmem_limit_bytes=VMEM_LIMIT_BYTES,
    )


def fused_conv_gemm(patches, w_mat, *, norm, act, out_dtype):
    """patches: (M, K) bf16, w_mat: (K, Cpad) bf16 -> (M, Cpad) out_dtype."""
    M, K = patches.shape
    C = w_mat.shape[1]

    if not norm:
        tm = _pick_tm(M, K, min_tiles=2)
        Mp = _round_up(M, tm)
        if Mp != M:
            patches = jnp.pad(patches, ((0, Mp - M), (0, 0)))
        nt = Mp // tm
        y = pl.pallas_call(
            _make_gemm_act_kernel(act),
            out_shape=jax.ShapeDtypeStruct((Mp, C), out_dtype),
            grid_spec=pltpu.PrefetchScalarGridSpec(
                num_scalar_prefetch=0,
                grid=(nt,),
                in_specs=[
                    pl.BlockSpec((tm, K), lambda i: (i, 0)),
                    pl.BlockSpec((K, C), lambda i: (0, 0)),
                ],
                out_specs=pl.BlockSpec((tm, C), lambda i: (i, 0)),
            ),
            compiler_params=_compiler_params(("parallel",)),
        )(patches, w_mat)
        return y[:M]

    # ---------------- BatchNorm layers ----------------
    tm = _pick_tm(M, K, min_tiles=1)
    Mp = _round_up(M, tm)
    if Mp != M:
        patches = jnp.pad(patches, ((0, Mp - M), (0, 0)))
    nt = Mp // tm

    out_bytes = jnp.dtype(out_dtype).itemsize
    fused_bytes = (Mp * C * 4                 # resident fp32 activation scratch
                   + Mp * C * out_bytes       # resident output block
                   + 2 * tm * K * 2           # double-buffered patch tiles
                   + 2 * K * C * 2)           # double-buffered weight
    if fused_bytes <= FUSED_BN_VMEM_BUDGET:
        # Fused single pallas_call: GEMM + batch stats + normalize + act.
        out = pl.pallas_call(
            _make_fused_bn_kernel(M, act),
            out_shape=jax.ShapeDtypeStruct((Mp, C), out_dtype),
            grid_spec=pltpu.PrefetchScalarGridSpec(
                num_scalar_prefetch=0,
                grid=(nt,),
                in_specs=[
                    pl.BlockSpec((tm, K), lambda i: (i, 0)),
                    pl.BlockSpec((K, C), lambda i: (0, 0)),
                ],
                out_specs=pl.BlockSpec((Mp, C), lambda i: (0, 0)),
                scratch_shapes=[pltpu.VMEM((Mp, C), jnp.float32)],
            ),
            compiler_params=_compiler_params(("arbitrary",)),
        )(patches, w_mat)
        return out[:M]

    # Fallback (activation too large to keep resident): two passes, but with a
    # resident (8, C) stats accumulator instead of per-tile broadcast partials.
    y, s_acc, q_acc = pl.pallas_call(
        _gemm_stats_kernel,
        out_shape=(
            jax.ShapeDtypeStruct((Mp, C), out_dtype),
            jax.ShapeDtypeStruct((8, C), jnp.float32),
            jax.ShapeDtypeStruct((8, C), jnp.float32),
        ),
        grid_spec=pltpu.PrefetchScalarGridSpec(
            num_scalar_prefetch=0,
            grid=(nt,),
            in_specs=[
                pl.BlockSpec((tm, K), lambda i: (i, 0)),
                pl.BlockSpec((K, C), lambda i: (0, 0)),
            ],
            out_specs=[
                pl.BlockSpec((tm, C), lambda i: (i, 0)),
                pl.BlockSpec((8, C), lambda i: (0, 0)),
                pl.BlockSpec((8, C), lambda i: (0, 0)),
            ],
        ),
        compiler_params=_compiler_params(("arbitrary",)),
    )(patches, w_mat)

    s_tot = s_acc[0]
    q_tot = q_acc[0]
    mean = s_tot / float(M)
    var = jnp.maximum(q_tot / float(M) - mean * mean, 0.0)
    scale = jax.lax.rsqrt(var + EPS)
    shift = -mean * scale

    out = pl.pallas_call(
        _make_norm_act_kernel(act),
        out_shape=jax.ShapeDtypeStruct((Mp, C), out_dtype),
        grid_spec=pltpu.PrefetchScalarGridSpec(
            num_scalar_prefetch=0,
            grid=(nt,),
            in_specs=[
                pl.BlockSpec((tm, C), lambda i: (i, 0)),
                pl.BlockSpec((1, C), lambda i: (0, 0)),
                pl.BlockSpec((1, C), lambda i: (0, 0)),
            ],
            out_specs=pl.BlockSpec((tm, C), lambda i: (i, 0)),
        ),
        compiler_params=_compiler_params(("parallel",)),
    )(y, scale.reshape(1, C), shift.reshape(1, C))
    return out[:M]


# ----------------------------------------------------------------------------
# JAX glue: im2col for k=4, s=2, p=1 convs
# ----------------------------------------------------------------------------
def _im2col(x, cin, k, stride):
    """x: (N, H, W, Cstore) spatially padded; uses only the first `cin` channels.
    Returns ((N*Ho*Wo, k*k*cin) bf16, (N, Ho, Wo))."""
    N, H, W, _ = x.shape
    Ho = (H - k) // stride + 1
    Wo = (W - k) // stride + 1
    cols = []
    for ky in range(k):
        for kx in range(k):
            cols.append(
                x[:, ky:ky + (Ho - 1) * stride + 1:stride,
                     kx:kx + (Wo - 1) * stride + 1:stride, :cin]
            )
    patches = jnp.stack(cols, axis=3)               # (N, Ho, Wo, k*k, cin)
    return patches.reshape(N * Ho * Wo, k * k * cin), (N, Ho, Wo)


def conv_layer(x, p, *, norm, act, out_dtype=jnp.bfloat16):
    """Conv2d(k=4, s=2, p=1, bias=False) + [BN] + act.  x: NHWC (bf16)."""
    xp = jnp.pad(x, ((0, 0), (PAD, PAD), (PAD, PAD), (0, 0)))
    patches, (N, Ho, Wo) = _im2col(xp, p["cin"], KSIZE, STRIDE)
    y = fused_conv_gemm(patches, p["w"], norm=norm, act=act, out_dtype=out_dtype)
    return y.reshape(N, Ho, Wo, -1)


# ----------------------------------------------------------------------------
# Parameters (deterministic synthetic init, PyTorch weight layout honored)
# ----------------------------------------------------------------------------
def _conv_weight_to_mat(w_conv, cin_pad, cout_pad):
    # (Cout, Cin, kh, kw) -> (kh*kw*Cin_pad, Cout_pad), K order = (ky, kx, cin)
    cout, cin, kh, kw = w_conv.shape
    w = jnp.transpose(w_conv, (2, 3, 1, 0))                       # (kh, kw, cin, cout)
    w = jnp.pad(w, ((0, 0), (0, 0), (0, cin_pad - cin), (0, cout_pad - cout)))
    return w.reshape(kh * kw * cin_pad, cout_pad).astype(jnp.bfloat16)


def make_params(key, in_channels, nker):
    defs = [
        (in_channels, nker),
        (nker, 2 * nker),
        (2 * nker, 4 * nker),
        (4 * nker, 8 * nker),
        (8 * nker, 16 * nker),
    ]
    cin0_pad = _round_up(in_channels, 8)
    params = []
    for li, (cin, cout) in enumerate(defs):
        key, k1 = jax.random.split(key)
        w = jax.random.normal(k1, (cout, cin, KSIZE, KSIZE), jnp.float32) * 0.05
        cin_used = cin0_pad if li == 0 else cin           # real channels fed to im2col
        cout_pad = _round_up(cout, LANE)                  # lane-dense output channels
        params.append({
            "w": _conv_weight_to_mat(w, cin_used, cout_pad),
            "cin": cin_used,
            "cout": cout,
        })
    return params


# ----------------------------------------------------------------------------
# Full discriminator forward
# ----------------------------------------------------------------------------
def pix2pix_discriminator(x_nchw, params):
    # NCHW in (PyTorch convention), NHWC bf16 internally, NCHW fp32 out.
    x = jnp.transpose(x_nchw, (0, 2, 3, 1)).astype(jnp.float32)
    cin = x.shape[-1]
    if params[0]["cin"] != cin:
        x = jnp.pad(x, ((0, 0), (0, 0), (0, 0), (0, params[0]["cin"] - cin)))
    x = x.astype(jnp.bfloat16)

    x = conv_layer(x, params[0], norm=False, act="leaky")   # enc1: no norm
    x = conv_layer(x, params[1], norm=True,  act="leaky")   # enc2: BN (fused)
    x = conv_layer(x, params[2], norm=True,  act="leaky")   # enc3: BN (fused)
    x = conv_layer(x, params[3], norm=True,  act="leaky")   # enc4: BN (fused)
    # enc5: no norm, no relu; torch.sigmoid fused into the Pallas GEMM kernel
    x = conv_layer(x, params[4], norm=False, act="sigmoid", out_dtype=jnp.float32)

    x = x[..., :params[4]["cout"]]                           # strip lane padding
    return jnp.transpose(x, (0, 3, 1, 2))


if __name__ == "__main__":
    # 5 stride-2 downsamples -> spatial must be a multiple of 32; keep nker small.
    N, IN_CH, NKER, HW = 2, 3, 8, 32

    key = jax.random.PRNGKey(0)
    key, kx = jax.random.split(key)
    x = jax.random.normal(kx, (N, IN_CH, HW, HW), jnp.float32)

    params = make_params(key, IN_CH, NKER)

    fwd = jax.jit(functools.partial(pix2pix_discriminator, params=params))
    out = fwd(x)
    out = jax.block_until_ready(out)

    assert out.shape == (N, 16 * NKER, HW // 32, HW // 32), out.shape
    assert out.dtype == jnp.float32
    assert bool(jnp.all(jnp.isfinite(out)))
    assert bool(jnp.all((out >= 0.0) & (out <= 1.0)))
    print("KERNEL_OK")
</pallas_src>

<mosaic_0001>
module attributes {stable_mosaic.version = 11 : i64} {
  func.func @kernel(%arg0: i32, %arg1: memref<256x128xbf16, #tpu.memory_space<vmem>>, %arg2: memref<128x128xbf16, #tpu.memory_space<vmem>>, %arg3: memref<256x128xbf16, #tpu.memory_space<vmem>>) attributes {dimension_semantics = [#tpu.dimension_semantics<parallel>], iteration_bounds = array<i64: 2>, scalar_prefetch = 0 : i64, scratch_operands = 0 : i64, tpu.core_type = #tpu.core_type<tc>, window_params = [{transform_indices = @transform_0, window_bounds = array<i64: 256, 128>}, {pipeline_mode = #tpu.pipeline_mode<synchronous>, transform_indices = @transform_1, window_bounds = array<i64: 128, 128>}, {transform_indices = @transform_2, window_bounds = array<i64: 256, 128>}]} {
    %c0 = arith.constant 0 : index
    %c0_0 = arith.constant 0 : index
    %0 = vector.load %arg1[%c0, %c0_0] : memref<256x128xbf16, #tpu.memory_space<vmem>>, vector<256x128xbf16>
    %c0_1 = arith.constant 0 : index
    %c0_2 = arith.constant 0 : index
    %1 = vector.load %arg2[%c0_1, %c0_2] : memref<128x128xbf16, #tpu.memory_space<vmem>>, vector<128x128xbf16>
    %cst = arith.constant dense<0.000000e+00> : vector<256x128xf32>
    %2 = tpu.matmul %0, %1, %cst {dimension_numbers = #tpu.dot_dimension_numbers<[1], [0], [0], [1], [0, 0, 1, 1], [], []>} : vector<256x128xbf16>, vector<128x128xbf16>, vector<256x128xf32> -> vector<256x128xf32>
    %cst_3 = arith.constant 0.000000e+00 : f32
    %3 = vector.broadcast %cst_3 : f32 to vector<256x128xf32>
    %4 = arith.cmpf oge, %2, %3 : vector<256x128xf32>
    %cst_4 = arith.constant 2.000000e-01 : f32
    %5 = vector.broadcast %cst_4 : f32 to vector<256x128xf32>
    %6 = arith.mulf %5, %2 : vector<256x128xf32>
    %7 = arith.select %4, %2, %6 : vector<256x128xi1>, vector<256x128xf32>
    %8 = arith.truncf %7 : vector<256x128xf32> to vector<256x128xbf16>
    %c0_5 = arith.constant 0 : index
    %c0_6 = arith.constant 0 : index
    %9 = vector.load %arg3[%c0_5, %c0_6] : memref<256x128xbf16, #tpu.memory_space<vmem>>, vector<256x128xbf16>
    tpu.vector_store %arg3[%c0_5, %c0_6], %8 {strides = array<i32>} : memref<256x128xbf16, #tpu.memory_space<vmem>>, vector<256x128xbf16>,
    return
  }
  func.func @transform_0(%arg0: i32) -> (i32, i32) {
    %c0_i32 = arith.constant 0 : i32
    %c0_i32_0 = arith.constant 0 : i32
    return %arg0, %c0_i32 : i32, i32
  }
  func.func @transform_1(%arg0: i32) -> (i32, i32) {
    %c0_i32 = arith.constant 0 : i32
    %c0_i32_0 = arith.constant 0 : i32
    %c0_i32_1 = arith.constant 0 : i32
    return %c0_i32, %c0_i32_0 : i32, i32
  }
  func.func @transform_2(%arg0: i32) -> (i32, i32) {
    %c0_i32 = arith.constant 0 : i32
    %c0_i32_0 = arith.constant 0 : i32
    return %arg0, %c0_i32 : i32, i32
  }
}

module attributes {stable_mosaic.version = 11 : i64} {
  func.func @kernel(%arg0: i32, %arg1: memref<128x128xbf16, #tpu.memory_space<vmem>>, %arg2: memref<128x128xbf16, #tpu.memory_space<vmem>>, %arg3: memref<128x128xbf16, #tpu.memory_space<vmem>>, %arg4: memref<128x128xf32, #tpu.memory_space<vmem>>) attributes {dimension_semantics = [#tpu.dimension_semantics<arbitrary>], iteration_bounds = array<i64: 1>, scalar_prefetch = 0 : i64, scratch_operands = 1 : i64, tpu.core_type = #tpu.core_type<tc>, window_params = [{transform_indices = @transform_0, window_bounds = array<i64: 128, 128>}, {pipeline_mode = #tpu.pipeline_mode<synchronous>, transform_indices = @transform_1, window_bounds = array<i64: 128, 128>}, {pipeline_mode = #tpu.pipeline_mode<synchronous>, transform_indices = @transform_2, window_bounds = array<i64: 128, 128>}]} {
    %c0 = arith.constant 0 : index
    %c0_0 = arith.constant 0 : index
    %0 = vector.load %arg1[%c0, %c0_0] : memref<128x128xbf16, #tpu.memory_space<vmem>>, vector<128x128xbf16>
    %c0_1 = arith.constant 0 : index
    %c0_2 = arith.constant 0 : index
    %1 = vector.load %arg2[%c0_1, %c0_2] : memref<128x128xbf16, #tpu.memory_space<vmem>>, vector<128x128xbf16>
    %cst = arith.constant dense<0.000000e+00> : vector<128x128xf32>
    %2 = tpu.matmul %0, %1, %cst {dimension_numbers = #tpu.dot_dimension_numbers<[1], [0], [0], [1], [0, 0, 1, 1], [], []>} : vector<128x128xbf16>, vector<128x128xbf16>, vector<128x128xf32> -> vector<128x128xf32>
    %c128_i32 = arith.constant 128 : i32
    %3 = arith.muli %arg0, %c128_i32 : i32
    %4 = tpu.assume_multiple %3, 8 : i32
    %5 = arith.index_cast %4 : i32 to index
    %c0_3 = arith.constant 0 : index
    %6 = vector.load %arg4[%5, %c0_3] : memref<128x128xf32, #tpu.memory_space<vmem>>, vector<128x128xf32>
    tpu.vector_store %arg4[%5, %c0_3], %2 {strides = array<i32>} : memref<128x128xf32, #tpu.memory_space<vmem>>, vector<128x128xf32>,
    %c0_i32 = arith.constant 0 : i32
    %7 = arith.cmpi eq, %arg0, %c0_i32 : i32
    %8 = arith.extui %7 : i1 to i32
    %c0_i32_4 = arith.constant 0 : i32
    %9 = arith.cmpi ne, %8, %c0_i32_4 : i32
    scf.if %9 {
      %c0_5 = arith.constant 0 : index
      %c0_6 = arith.constant 0 : index
      %10 = vector.load %arg4[%c0_5, %c0_6] : memref<128x128xf32, #tpu.memory_space<vmem>>, vector<128x128xf32>
      %cst_7 = arith.constant dense<0.000000e+00> : vector<128xf32>
      %11 = vector.multi_reduction <add>, %10, %cst_7 [0] : vector<128x128xf32> to vector<128xf32>
      %12 = vector.shape_cast %11 : vector<128xf32> to vector<1x128xf32>
      %cst_8 = arith.constant 7.812500e-03 : f32
      %13 = vector.broadcast %cst_8 : f32 to vector<1x128xf32>
      %14 = arith.mulf %12, %13 : vector<1x128xf32>
      %15 = vector.broadcast %14 : vector<1x128xf32> to vector<128x128xf32>
      %16 = arith.subf %10, %15 : vector<128x128xf32>
      %17 = arith.mulf %16, %16 : vector<128x128xf32>
      %cst_9 = arith.constant dense<0.000000e+00> : vector<128xf32>
      %18 = vector.multi_reduction <add>, %17, %cst_9 [0] : vector<128x128xf32> to vector<128xf32>
      %19 = vector.shape_cast %18 : vector<128xf32> to vector<1x128xf32>
      %cst_10 = arith.constant 7.812500e-03 : f32
      %20 = vector.broadcast %cst_10 : f32 to vector<1x128xf32>
      %21 = arith.mulf %19, %20 : vector<1x128xf32>
      %cst_11 = arith.constant 0.000000e+00 : f32
      %22 = vector.broadcast %cst_11 : f32 to vector<1x128xf32>
      %23 = arith.maximumf %21, %22 : vector<1x128xf32>
      %cst_12 = arith.constant 9.99999974E-6 : f32
      %24 = vector.broadcast %cst_12 : f32 to vector<1x128xf32>
      %25 = arith.addf %23, %24 : vector<1x128xf32>
      %26 = math.rsqrt %25 : vector<1x128xf32>
      %27 = vector.broadcast %26 : vector<1x128xf32> to vector<128x128xf32>
      %28 = arith.mulf %16, %27 : vector<128x128xf32>
      %cst_13 = arith.constant 0.000000e+00 : f32
      %29 = vector.broadcast %cst_13 : f32 to vector<128x128xf32>
      %30 = arith.cmpf oge, %28, %29 : vector<128x128xf32>
      %cst_14 = arith.constant 2.000000e-01 : f32
      %31 = vector.broadcast %cst_14 : f32 to vector<128x128xf32>
      %32 = arith.mulf %31, %28 : vector<128x128xf32>
      %33 = arith.select %30, %28, %32 : vector<128x128xi1>, vector<128x128xf32>
      %34 = arith.truncf %33 : vector<128x128xf32> to vector<128x128xbf16>
      %c0_15 = arith.constant 0 : index
      %c0_16 = arith.constant 0 : index
      %35 = vector.load %arg3[%c0_15, %c0_16] : memref<128x128xbf16, #tpu.memory_space<vmem>>, vector<128x128xbf16>
      tpu.vector_store %arg3[%c0_15, %c0_16], %34 {strides = array<i32>} : memref<128x128xbf16, #tpu.memory_space<vmem>>, vector<128x128xbf16>,
    } else {
    }
    return
  }
  func.func @transform_0(%arg0: i32) -> (i32, i32) {
    %c0_i32 = arith.constant 0 : i32
    %c0_i32_0 = arith.constant 0 : i32
    return %arg0, %c0_i32 : i32, i32
  }
  func.func @transform_1(%arg0: i32) -> (i32, i32) {
    %c0_i32 = arith.constant 0 : i32
    %c0_i32_0 = arith.constant 0 : i32
    %c0_i32_1 = arith.constant 0 : i32
    return %c0_i32, %c0_i32_0 : i32, i32
  }
  func.func @transform_2(%arg0: i32) -> (i32, i32) {
    %c0_i32 = arith.constant 0 : i32
    %c0_i32_0 = arith.constant 0 : i32
    %c0_i32_1 = arith.constant 0 : i32
    return %c0_i32, %c0_i32_0 : i32, i32
  }
}

module attributes {stable_mosaic.version = 11 : i64} {
  func.func @kernel(%arg0: i32, %arg1: memref<32x256xbf16, #tpu.memory_space<vmem>>, %arg2: memref<256x128xbf16, #tpu.memory_space<vmem>>, %arg3: memref<32x128xbf16, #tpu.memory_space<vmem>>, %arg4: memref<32x128xf32, #tpu.memory_space<vmem>>) attributes {dimension_semantics = [#tpu.dimension_semantics<arbitrary>], iteration_bounds = array<i64: 1>, scalar_prefetch = 0 : i64, scratch_operands = 1 : i64, tpu.core_type = #tpu.core_type<tc>, window_params = [{transform_indices = @transform_0, window_bounds = array<i64: 32, 256>}, {pipeline_mode = #tpu.pipeline_mode<synchronous>, transform_indices = @transform_1, window_bounds = array<i64: 256, 128>}, {pipeline_mode = #tpu.pipeline_mode<synchronous>, transform_indices = @transform_2, window_bounds = array<i64: 32, 128>}]} {
    %c0 = arith.constant 0 : index
    %c0_0 = arith.constant 0 : index
    %0 = vector.load %arg1[%c0, %c0_0] : memref<32x256xbf16, #tpu.memory_space<vmem>>, vector<32x256xbf16>
    %c0_1 = arith.constant 0 : index
    %c0_2 = arith.constant 0 : index
    %1 = vector.load %arg2[%c0_1, %c0_2] : memref<256x128xbf16, #tpu.memory_space<vmem>>, vector<256x128xbf16>
    %cst = arith.constant dense<0.000000e+00> : vector<32x128xf32>
    %2 = tpu.matmul %0, %1, %cst {dimension_numbers = #tpu.dot_dimension_numbers<[1], [0], [0], [1], [0, 0, 1, 1], [], []>} : vector<32x256xbf16>, vector<256x128xbf16>, vector<32x128xf32> -> vector<32x128xf32>
    %c32_i32 = arith.constant 32 : i32
    %3 = arith.muli %arg0, %c32_i32 : i32
    %4 = tpu.assume_multiple %3, 8 : i32
    %5 = arith.index_cast %4 : i32 to index
    %c0_3 = arith.constant 0 : index
    %6 = vector.load %arg4[%5, %c0_3] : memref<32x128xf32, #tpu.memory_space<vmem>>, vector<32x128xf32>
    tpu.vector_store %arg4[%5, %c0_3], %2 {strides = array<i32>} : memref<32x128xf32, #tpu.memory_space<vmem>>, vector<32x128xf32>,
    %c0_i32 = arith.constant 0 : i32
    %7 = arith.cmpi eq, %arg0, %c0_i32 : i32
    %8 = arith.extui %7 : i1 to i32
    %c0_i32_4 = arith.constant 0 : i32
    %9 = arith.cmpi ne, %8, %c0_i32_4 : i32
    scf.if %9 {
      %c0_5 = arith.constant 0 : index
      %c0_6 = arith.constant 0 : index
      %10 = vector.load %arg4[%c0_5, %c0_6] : memref<32x128xf32, #tpu.memory_space<vmem>>, vector<32x128xf32>
      %cst_7 = arith.constant dense<0.000000e+00> : vector<128xf32>
      %11 = vector.multi_reduction <add>, %10, %cst_7 [0] : vector<32x128xf32> to vector<128xf32>
      %12 = vector.shape_cast %11 : vector<128xf32> to vector<1x128xf32>
      %cst_8 = arith.constant 3.125000e-02 : f32
      %13 = vector.broadcast %cst_8 : f32 to vector<1x128xf32>
      %14 = arith.mulf %12, %13 : vector<1x128xf32>
      %15 = vector.broadcast %14 : vector<1x128xf32> to vector<32x128xf32>
      %16 = arith.subf %10, %15 : vector<32x128xf32>
      %17 = arith.mulf %16, %16 : vector<32x128xf32>
      %cst_9 = arith.constant dense<0.000000e+00> : vector<128xf32>
      %18 = vector.multi_reduction <add>, %17, %cst_9 [0] : vector<32x128xf32> to vector<128xf32>
      %19 = vector.shape_cast %18 : vector<128xf32> to vector<1x128xf32>
      %cst_10 = arith.constant 3.125000e-02 : f32
      %20 = vector.broadcast %cst_10 : f32 to vector<1x128xf32>
      %21 = arith.mulf %19, %20 : vector<1x128xf32>
      %cst_11 = arith.constant 0.000000e+00 : f32
      %22 = vector.broadcast %cst_11 : f32 to vector<1x128xf32>
      %23 = arith.maximumf %21, %22 : vector<1x128xf32>
      %cst_12 = arith.constant 9.99999974E-6 : f32
      %24 = vector.broadcast %cst_12 : f32 to vector<1x128xf32>
      %25 = arith.addf %23, %24 : vector<1x128xf32>
      %26 = math.rsqrt %25 : vector<1x128xf32>
      %27 = vector.broadcast %26 : vector<1x128xf32> to vector<32x128xf32>
      %28 = arith.mulf %16, %27 : vector<32x128xf32>
      %cst_13 = arith.constant 0.000000e+00 : f32
      %29 = vector.broadcast %cst_13 : f32 to vector<32x128xf32>
      %30 = arith.cmpf oge, %28, %29 : vector<32x128xf32>
      %cst_14 = arith.constant 2.000000e-01 : f32
      %31 = vector.broadcast %cst_14 : f32 to vector<32x128xf32>
      %32 = arith.mulf %31, %28 : vector<32x128xf32>
      %33 = arith.select %30, %28, %32 : vector<32x128xi1>, vector<32x128xf32>
      %34 = arith.truncf %33 : vector<32x128xf32> to vector<32x128xbf16>
      %c0_15 = arith.constant 0 : index
      %c0_16 = arith.constant 0 : index
      %35 = vector.load %arg3[%c0_15, %c0_16] : memref<32x128xbf16, #tpu.memory_space<vmem>>, vector<32x128xbf16>
      tpu.vector_store %arg3[%c0_15, %c0_16], %34 {strides = array<i32>} : memref<32x128xbf16, #tpu.memory_space<vmem>>, vector<32x128xbf16>,
    } else {
    }
    return
  }
  func.func @transform_0(%arg0: i32) -> (i32, i32) {
    %c0_i32 = arith.constant 0 : i32
    %c0_i32_0 = arith.constant 0 : i32
    return %arg0, %c0_i32 : i32, i32
  }
  func.func @transform_1(%arg0: i32) -> (i32, i32) {
    %c0_i32 = arith.constant 0 : i32
    %c0_i32_0 = arith.constant 0 : i32
    %c0_i32_1 = arith.constant 0 : i32
    return %c0_i32, %c0_i32_0 : i32, i32
  }
  func.func @transform_2(%arg0: i32) -> (i32, i32) {
    %c0_i32 = arith.constant 0 : i32
    %c0_i32_0 = arith.constant 0 : i32
    %c0_i32_1 = arith.constant 0 : i32
    return %c0_i32, %c0_i32_0 : i32, i32
  }
}

module attributes {stable_mosaic.version = 11 : i64} {
  func.func @kernel(%arg0: i32, %arg1: memref<8x512xbf16, #tpu.memory_space<vmem>>, %arg2: memref<512x128xbf16, #tpu.memory_space<vmem>>, %arg3: memref<8x128xbf16, #tpu.memory_space<vmem>>, %arg4: memref<8x128xf32, #tpu.memory_space<vmem>>) attributes {dimension_semantics = [#tpu.dimension_semantics<arbitrary>], iteration_bounds = array<i64: 1>, scalar_prefetch = 0 : i64, scratch_operands = 1 : i64, tpu.core_type = #tpu.core_type<tc>, window_params = [{transform_indices = @transform_0, window_bounds = array<i64: 8, 512>}, {pipeline_mode = #tpu.pipeline_mode<synchronous>, transform_indices = @transform_1, window_bounds = array<i64: 512, 128>}, {pipeline_mode = #tpu.pipeline_mode<synchronous>, transform_indices = @transform_2, window_bounds = array<i64: 8, 128>}]} {
    %c0 = arith.constant 0 : index
    %c0_0 = arith.constant 0 : index
    %0 = vector.load %arg1[%c0, %c0_0] : memref<8x512xbf16, #tpu.memory_space<vmem>>, vector<8x512xbf16>
    %c0_1 = arith.constant 0 : index
    %c0_2 = arith.constant 0 : index
    %1 = vector.load %arg2[%c0_1, %c0_2] : memref<512x128xbf16, #tpu.memory_space<vmem>>, vector<512x128xbf16>
    %cst = arith.constant dense<0.000000e+00> : vector<8x128xf32>
    %2 = tpu.matmul %0, %1, %cst {dimension_numbers = #tpu.dot_dimension_numbers<[1], [0], [0], [1], [0, 0, 1, 1], [], []>} : vector<8x512xbf16>, vector<512x128xbf16>, vector<8x128xf32> -> vector<8x128xf32>
    %c8_i32 = arith.constant 8 : i32
    %3 = arith.muli %arg0, %c8_i32 : i32
    %4 = tpu.assume_multiple %3, 8 : i32
    %5 = arith.index_cast %4 : i32 to index
    %c0_3 = arith.constant 0 : index
    %6 = vector.load %arg4[%5, %c0_3] : memref<8x128xf32, #tpu.memory_space<vmem>>, vector<8x128xf32>
    tpu.vector_store %arg4[%5, %c0_3], %2 {strides = array<i32>} : memref<8x128xf32, #tpu.memory_space<vmem>>, vector<8x128xf32>,
    %c0_i32 = arith.constant 0 : i32
    %7 = arith.cmpi eq, %arg0, %c0_i32 : i32
    %8 = arith.extui %7 : i1 to i32
    %c0_i32_4 = arith.constant 0 : i32
    %9 = arith.cmpi ne, %8, %c0_i32_4 : i32
    scf.if %9 {
      %c0_5 = arith.constant 0 : index
      %c0_6 = arith.constant 0 : index
      %10 = vector.load %arg4[%c0_5, %c0_6] : memref<8x128xf32, #tpu.memory_space<vmem>>, vector<8x128xf32>
      %cst_7 = arith.constant dense<0.000000e+00> : vector<128xf32>
      %11 = vector.multi_reduction <add>, %10, %cst_7 [0] : vector<8x128xf32> to vector<128xf32>
      %12 = vector.shape_cast %11 : vector<128xf32> to vector<1x128xf32>
      %cst_8 = arith.constant 1.250000e-01 : f32
      %13 = vector.broadcast %cst_8 : f32 to vector<1x128xf32>
      %14 = arith.mulf %12, %13 : vector<1x128xf32>
      %15 = vector.broadcast %14 : vector<1x128xf32> to vector<8x128xf32>
      %16 = arith.subf %10, %15 : vector<8x128xf32>
      %17 = arith.mulf %16, %16 : vector<8x128xf32>
      %cst_9 = arith.constant dense<0.000000e+00> : vector<128xf32>
      %18 = vector.multi_reduction <add>, %17, %cst_9 [0] : vector<8x128xf32> to vector<128xf32>
      %19 = vector.shape_cast %18 : vector<128xf32> to vector<1x128xf32>
      %cst_10 = arith.constant 1.250000e-01 : f32
      %20 = vector.broadcast %cst_10 : f32 to vector<1x128xf32>
      %21 = arith.mulf %19, %20 : vector<1x128xf32>
      %cst_11 = arith.constant 0.000000e+00 : f32
      %22 = vector.broadcast %cst_11 : f32 to vector<1x128xf32>
      %23 = arith.maximumf %21, %22 : vector<1x128xf32>
      %cst_12 = arith.constant 9.99999974E-6 : f32
      %24 = vector.broadcast %cst_12 : f32 to vector<1x128xf32>
      %25 = arith.addf %23, %24 : vector<1x128xf32>
      %26 = math.rsqrt %25 : vector<1x128xf32>
      %27 = vector.broadcast %26 : vector<1x128xf32> to vector<8x128xf32>
      %28 = arith.mulf %16, %27 : vector<8x128xf32>
      %cst_13 = arith.constant 0.000000e+00 : f32
      %29 = vector.broadcast %cst_13 : f32 to vector<8x128xf32>
      %30 = arith.cmpf oge, %28, %29 : vector<8x128xf32>
      %cst_14 = arith.constant 2.000000e-01 : f32
      %31 = vector.broadcast %cst_14 : f32 to vector<8x128xf32>
      %32 = arith.mulf %31, %28 : vector<8x128xf32>
      %33 = arith.select %30, %28, %32 : vector<8x128xi1>, vector<8x128xf32>
      %34 = arith.truncf %33 : vector<8x128xf32> to vector<8x128xbf16>
      %c0_15 = arith.constant 0 : index
      %c0_16 = arith.constant 0 : index
      %35 = vector.load %arg3[%c0_15, %c0_16] : memref<8x128xbf16, #tpu.memory_space<vmem>>, vector<8x128xbf16>
      tpu.vector_store %arg3[%c0_15, %c0_16], %34 {strides = array<i32>} : memref<8x128xbf16, #tpu.memory_space<vmem>>, vector<8x128xbf16>,
    } else {
    }
    return
  }
  func.func @transform_0(%arg0: i32) -> (i32, i32) {
    %c0_i32 = arith.constant 0 : i32
    %c0_i32_0 = arith.constant 0 : i32
    return %arg0, %c0_i32 : i32, i32
  }
  func.func @transform_1(%arg0: i32) -> (i32, i32) {
    %c0_i32 = arith.constant 0 : i32
    %c0_i32_0 = arith.constant 0 : i32
    %c0_i32_1 = arith.constant 0 : i32
    return %c0_i32, %c0_i32_0 : i32, i32
  }
  func.func @transform_2(%arg0: i32) -> (i32, i32) {
    %c0_i32 = arith.constant 0 : i32
    %c0_i32_0 = arith.constant 0 : i32
    %c0_i32_1 = arith.constant 0 : i32
    return %c0_i32, %c0_i32_0 : i32, i32
  }
}

module attributes {stable_mosaic.version = 11 : i64} {
  func.func @kernel(%arg0: i32, %arg1: memref<8x1024xbf16, #tpu.memory_space<vmem>>, %arg2: memref<1024x128xbf16, #tpu.memory_space<vmem>>, %arg3: memref<8x128xf32, #tpu.memory_space<vmem>>) attributes {dimension_semantics = [#tpu.dimension_semantics<parallel>], iteration_bounds = array<i64: 1>, scalar_prefetch = 0 : i64, scratch_operands = 0 : i64, tpu.core_type = #tpu.core_type<tc>, window_params = [{transform_indices = @transform_0, window_bounds = array<i64: 8, 1024>}, {pipeline_mode = #tpu.pipeline_mode<synchronous>, transform_indices = @transform_1, window_bounds = array<i64: 1024, 128>}, {transform_indices = @transform_2, window_bounds = array<i64: 8, 128>}]} {
    %c0 = arith.constant 0 : index
    %c0_0 = arith.constant 0 : index
    %0 = vector.load %arg1[%c0, %c0_0] : memref<8x1024xbf16, #tpu.memory_space<vmem>>, vector<8x1024xbf16>
    %c0_1 = arith.constant 0 : index
    %c0_2 = arith.constant 0 : index
    %1 = vector.load %arg2[%c0_1, %c0_2] : memref<1024x128xbf16, #tpu.memory_space<vmem>>, vector<1024x128xbf16>
    %cst = arith.constant dense<0.000000e+00> : vector<8x128xf32>
    %2 = tpu.matmul %0, %1, %cst {dimension_numbers = #tpu.dot_dimension_numbers<[1], [0], [0], [1], [0, 0, 1, 1], [], []>} : vector<8x1024xbf16>, vector<1024x128xbf16>, vector<8x128xf32> -> vector<8x128xf32>
    %cst_3 = arith.constant 0.000000e+00 : f32
    %3 = vector.broadcast %cst_3 : f32 to vector<8x128xf32>
    %4 = arith.subf %3, %2 : vector<8x128xf32>
    %5 = math.exp %4 : vector<8x128xf32>
    %cst_4 = arith.constant 1.000000e+00 : f32
    %6 = vector.broadcast %cst_4 : f32 to vector<8x128xf32>
    %7 = arith.addf %6, %5 : vector<8x128xf32>
    %cst_5 = arith.constant 1.000000e+00 : f32
    %8 = vector.broadcast %cst_5 : f32 to vector<8x128xf32>
    %9 = arith.divf %8, %7 : vector<8x128xf32>
    %c0_6 = arith.constant 0 : index
    %c0_7 = arith.constant 0 : index
    %10 = vector.load %arg3[%c0_6, %c0_7] : memref<8x128xf32, #tpu.memory_space<vmem>>, vector<8x128xf32>
    tpu.vector_store %arg3[%c0_6, %c0_7], %9 {strides = array<i32>} : memref<8x128xf32, #tpu.memory_space<vmem>>, vector<8x128xf32>,
    return
  }
  func.func @transform_0(%arg0: i32) -> (i32, i32) {
    %c0_i32 = arith.constant 0 : i32
    %c0_i32_0 = arith.constant 0 : i32
    return %arg0, %c0_i32 : i32, i32
  }
  func.func @transform_1(%arg0: i32) -> (i32, i32) {
    %c0_i32 = arith.constant 0 : i32
    %c0_i32_0 = arith.constant 0 : i32
    %c0_i32_1 = arith.constant 0 : i32
    return %c0_i32, %c0_i32_0 : i32, i32
  }
  func.func @transform_2(%arg0: i32) -> (i32, i32) {
    %c0_i32 = arith.constant 0 : i32
    %c0_i32_0 = arith.constant 0 : i32
    return %arg0, %c0_i32 : i32, i32
  }
}

</mosaic_0001>

<llo_original>
// kernel: pix2pix_discriminator.5
$region0: #{pix2pix_discriminator.5}
  #allocation0 [shape = 'u32[]', space=smem, size = 0x4, offset = 0x4, fixed_abs, tag = 'smem constant byte address 0x4 - core index']
  #allocation1 [shape = 'u32[144,128]{1,0:T(1,128)}', space=vmem, size = 0x12000, scoped, tag = 'internal scratch']
  %s0 = inlined_call_operand.vmem [shape: bf16[512,128], index: 0, kind: input, shape index: {}]
  %s1 = inlined_call_operand.vmem [shape: bf16[128,128], index: 1, kind: input, shape index: {}]
  %s2 = inlined_call_operand.vmem [shape: bf16[512,128], index: 2, kind: output, shape index: {}]
  %s3 = sld [smem:[#allocation0]]
  $region41: #{pix2pix_discriminator.5} parent=0
    _
  %s5 = ssub.s32 1, %s3
  %s6 = scalar_select 0, %s5, %s3
  loop: start=0, step=1, limit=4
  $region2: #{pix2pix_discriminator.5} parent=0 // loop_pre_header
    _
  $region3: #{pix2pix_discriminator.5} parent=0 // loop_header
    %s8 = sphi 0, %s12
    %p9 = scmp.ge.s32.totalorder %s8, 4
    %s18 = sphi 0, %s20
    %s21 = sphi 0, %s18
    %s22 = sphi 0, %s21
    %s38 = sphi 0, %s22
    %s42 = sphi 0, %s42
    %s44 = sphi 0, %s42
    %s45 = sphi 0, %s44
    %s59 = sphi 0, %s45
    %s65 = sphi 0, %s67
    %s68 = sphi 0, %s65
    %s69 = sphi 0, %s68
    %s85 = sphi 0, %s69
  $region4: #{pix2pix_discriminator.5} parent=0 // loop_header_branch
    %11 = sbr.rel (%p9) target = $region8
  $region5: #{pix2pix_discriminator.5} parent=0 // loop_body
    %s13 = ssub.s32 %s8, 1
    %s14 = ssub.s32 %s8, 2
    %s15 = sadd.s32 %s8, 1
    %s16 = ssub.s32 %s8, %s15
    %p17 = scmp.eq.s32.totalorder %s16, 0
    %s19 = sadd.s32 %s18, 1
    %s20 = scalar_select %p17, %s18, %s19
    %p23 = pneg %p17
    %p24 = scmp.eq.s32.totalorder %s8, 1
    %p25 = por %p23, %p24
    %p26 = scmp.ne.s32.totalorder %s18, %s21
    %p27 = scmp.eq.s32.totalorder %s8, 0
    %p28 = por %p26, %p27
    %p29 = scmp.ne.s32.totalorder %s18, %s21
    %p30 = scmp.eq.s32.totalorder %s13, 1
    %p31 = por %p29, %p30
    %p32 = scmp.ne.s32.totalorder %s21, %s22
    %p33 = scmp.eq.s32.totalorder %s13, 0
    %p34 = por %p32, %p33
    %p35 = scmp.ne.s32.totalorder %s21, %s22
    %p36 = scmp.eq.s32.totalorder %s14, 1
    %p37 = por %p35, %p36
    %p39 = scmp.ne.s32.totalorder %s22, %s38
    %p40 = scmp.eq.s32.totalorder %s14, 0
    %p41 = por %p39, %p40
    %s43 = sadd.s32 %s42, 1
    %p46 = scmp.eq.s32.totalorder %s8, 1
    %p47 = scmp.ne.s32.totalorder %s42, %s44
    %p48 = scmp.eq.s32.totalorder %s8, 0
    %p49 = por %p47, %p48
    %p50 = scmp.ne.s32.totalorder %s42, %s44
    %p51 = scmp.eq.s32.totalorder %s13, 1
    %p52 = por %p50, %p51
    %p53 = scmp.ne.s32.totalorder %s44, %s45
    %p54 = scmp.eq.s32.totalorder %s13, 0
    %p55 = por %p53, %p54
    %p56 = scmp.ne.s32.totalorder %s44, %s45
    %p57 = scmp.eq.s32.totalorder %s14, 1
    %p58 = por %p56, %p57
    %p60 = scmp.ne.s32.totalorder %s45, %s59
    %p61 = scmp.eq.s32.totalorder %s14, 0
    %p62 = por %p60, %p61
    %s63 = ssub.s32 %s8, %s15
    %p64 = scmp.eq.s32.totalorder %s63, 0
    %s66 = sadd.s32 %s65, 1
    %s67 = scalar_select %p64, %s65, %s66
    %p70 = pneg %p64
    %p71 = scmp.eq.s32.totalorder %s8, 1
    %p72 = por %p70, %p71
    %p73 = scmp.ne.s32.totalorder %s65, %s68
    %p74 = scmp.eq.s32.totalorder %s8, 0
    %p75 = por %p73, %p74
    %p76 = scmp.ne.s32.totalorder %s65, %s68
    %p77 = scmp.eq.s32.totalorder %s13, 1
    %p78 = por %p76, %p77
    %p79 = scmp.ne.s32.totalorder %s68, %s69
    %p80 = scmp.eq.s32.totalorder %s13, 0
    %p81 = por %p79, %p80
    %p82 = scmp.ne.s32.totalorder %s68, %s69
    %p83 = scmp.eq.s32.totalorder %s14, 1
    %p84 = por %p82, %p83
    %p86 = scmp.ne.s32.totalorder %s69, %s85
    %p87 = scmp.eq.s32.totalorder %s14, 0
    %p88 = por %p86, %p87
    %p89 = scmp.le.s32.totalorder 1, %s8
    %p90 = scmp.lt.s32.totalorder %s8, 3
    %p91 = pnand %p89, %p90
    %p92 = pneg %p91
    // Predicated region
    $region9: #{pix2pix_discriminator.5} parent=5 // pred_check
      _
    $region10: #{pix2pix_discriminator.5} parent=5 // pred_check_branch
      %94 = sbr.rel (%p91) target = $region12
    $region11: #{pix2pix_discriminator.5} parent=5 // pred_region
      %s95 = ssub.s32 %s8, 1
      // Predicated region
      $region13: #{pix2pix_discriminator.5} parent=11 // pred_check
        %p96 = pneg %p55
      $region14: #{pix2pix_discriminator.5} parent=11 // pred_check_branch
        %98 = sbr.rel (%p96) target = $region16
      $region15: #{pix2pix_discriminator.5} parent=11 // pred_region
        _
      $region16: #{pix2pix_discriminator.5} parent=11 // pred_fallthru
        _
    $region12: #{pix2pix_discriminator.5} parent=5 // pred_fallthru
      _
    %p99 = scmp.lt.s32.totalorder %s8, 2
    // Predicated region
    $region17: #{pix2pix_discriminator.5} parent=5 // pred_check
      %p100 = pneg %p99
    $region18: #{pix2pix_discriminator.5} parent=5 // pred_check_branch
      %102 = sbr.rel (%p100) target = $region20
    $region19: #{pix2pix_discriminator.5} parent=5 // pred_region
      // Predicated region
      $region21: #{pix2pix_discriminator.5} parent=19 // pred_check
        %p103 = pneg %p28
      $region22: #{pix2pix_discriminator.5} parent=19 // pred_check_branch
        %105 = sbr.rel (%p103) target = $region24
      $region23: #{pix2pix_discriminator.5} parent=19 // pred_region
        %s106 = smul.u32 32, %s8
        %p107 = scmp.lt.s32.totalorder %s106, 63
        %s108 = scalar_select %p107, %s106, 63
        %s109 = smul.addr %s108, 4
        %s110 = scalar_lea.vmem %s0, %s109
        %s111 = smul.u32 32, %s8
      $region24: #{pix2pix_discriminator.5} parent=19 // pred_fallthru
        _
    $region20: #{pix2pix_discriminator.5} parent=5 // pred_fallthru
      _
    %p112 = scmp.le.s32.totalorder 1, %s8
    %p113 = scmp.lt.s32.totalorder %s8, 3
    %p114 = pnand %p112, %p113
    %p115 = pneg %p114
    // Predicated region
    $region25: #{pix2pix_discriminator.5} parent=5 // pred_check
      _
    $region26: #{pix2pix_discriminator.5} parent=5 // pred_check_branch
      %117 = sbr.rel (%p114) target = $region28
    $region27: #{pix2pix_discriminator.5} parent=5 // pred_region
      %s118 = ssub.s32 %s8, 1
      %s119 = smul.u32 32, %s13
      %p120 = scmp.lt.s32.totalorder %s119, 63
      %s121 = scalar_select %p120, %s119, 63
      %s122 = smul.addr %s121, 4
      %s123 = scalar_lea.vmem %s0, %s122
      %p124 = pneg %p34
      %p125 = pneg %p31
      %p126 = pneg %p55
      %p127 = pneg %p52
      %p128 = pneg %p81
      %p129 = pneg %p78
      %s130 = smul.u32 32, %s13
      %p131 = scmp.lt.s32.totalorder %s130, 63
      %s132 = scalar_select %p131, %s130, 63
      %s133 = smul.addr %s132, 4
      %s134 = scalar_lea.vmem %s2, %s133
      %s135 = smul.u32 32, %s13
      %p136 = scmp.lt.s32.totalorder %s135, 63
      %s137 = scalar_select %p136, %s135, 63
      %s138 = smul.addr %s137, 4
      %s139 = scalar_lea.vmem %s0, %s138
      %s140 = smul.u32 32, %s13
      %s141 = smul.u32 32, %s13
      %p142 = scmp.lt.s32.totalorder %s141, 63
      %s143 = scalar_select %p142, %s141, 63
      %s144 = smul.addr %s143, 4
      %s145 = scalar_lea.vmem %s2, %s144
      %s146 = smul.u32 32, %s13
      %v148 = vld [vmem:[%s139] sm:$0xf]
      %v149 = vld [vmem:[%s139 + $0x4] sm:$0xf]
      %v150 = vld [vmem:[%s139 + $0x8] sm:$0xf]
      %v151 = vld [vmem:[%s139 + $0xc] sm:$0xf]
      %v152 = vld [vmem:[%s139 + $0x10] sm:$0xf]
      %v153 = vld [vmem:[%s139 + $0x14] sm:$0xf]
      %v154 = vld [vmem:[%s139 + $0x18] sm:$0xf]
      %v155 = vld [vmem:[%s139 + $0x1c] sm:$0xf]
      %v156 = vld [vmem:[%s139 + $0x20] sm:$0xf]
      %v157 = vld [vmem:[%s139 + $0x24] sm:$0xf]
      %v158 = vld [vmem:[%s139 + $0x28] sm:$0xf]
      %v159 = vld [vmem:[%s139 + $0x2c] sm:$0xf]
      %v160 = vld [vmem:[%s139 + $0x30] sm:$0xf]
      %v161 = vld [vmem:[%s139 + $0x34] sm:$0xf]
      %v162 = vld [vmem:[%s139 + $0x38] sm:$0xf]
      %v163 = vld [vmem:[%s139 + $0x3c] sm:$0xf]
      %v164 = vld [vmem:[%s139 + $0x40] sm:$0xf]
      %v165 = vld [vmem:[%s139 + $0x44] sm:$0xf]
      %v166 = vld [vmem:[%s139 + $0x48] sm:$0xf]
      %v167 = vld [vmem:[%s139 + $0x4c] sm:$0xf]
      %v168 = vld [vmem:[%s139 + $0x50] sm:$0xf]
      %v169 = vld [vmem:[%s139 + $0x54] sm:$0xf]
      %v170 = vld [vmem:[%s139 + $0x58] sm:$0xf]
      %v171 = vld [vmem:[%s139 + $0x5c] sm:$0xf]
      %v172 = vld [vmem:[%s139 + $0x60] sm:$0xf]
      %v173 = vld [vmem:[%s139 + $0x64] sm:$0xf]
      %v174 = vld [vmem:[%s139 + $0x68] sm:$0xf]
      %v175 = vld [vmem:[%s139 + $0x6c] sm:$0xf]
      %v176 = vld [vmem:[%s139 + $0x70] sm:$0xf]
      %v177 = vld [vmem:[%s139 + $0x74] sm:$0xf]
      %v178 = vld [vmem:[%s139 + $0x78] sm:$0xf]
      %v179 = vld [vmem:[%s139 + $0x7c] sm:$0xf]
      %v180 = vld [vmem:[%s1] sm:$0xf]
      %v181 = vld [vmem:[%s1 + $0x4] sm:$0xf]
      %v182 = vld [vmem:[%s1 + $0x8] sm:$0xf]
      %v183 = vld [vmem:[%s1 + $0xc] sm:$0xf]
      %v184 = vld [vmem:[%s1 + $0x10] sm:$0xf]
      %v185 = vld [vmem:[%s1 + $0x14] sm:$0xf]
      %v186 = vld [vmem:[%s1 + $0x18] sm:$0xf]
      %v187 = vld [vmem:[%s1 + $0x1c] sm:$0xf]
      %v188 = vld [vmem:[%s1 + $0x20] sm:$0xf]
      %v189 = vld [vmem:[%s1 + $0x24] sm:$0xf]
      %v190 = vld [vmem:[%s1 + $0x28] sm:$0xf]
      %v191 = vld [vmem:[%s1 + $0x2c] sm:$0xf]
      %v192 = vld [vmem:[%s1 + $0x30] sm:$0xf]
      %v193 = vld [vmem:[%s1 + $0x34] sm:$0xf]
      %v194 = vld [vmem:[%s1 + $0x38] sm:$0xf]
      %v195 = vld [vmem:[%s1 + $0x3c] sm:$0xf]
      %v228 = vunpack.c.l.b16 %v148
      %v229 = vunpack.c.l.b16 %v149
      %v230 = vunpack.c.l.b16 %v150
      %v231 = vunpack.c.l.b16 %v151
      %v232 = vunpack.c.l.b16 %v152
      %v233 = vunpack.c.l.b16 %v153
      %v234 = vunpack.c.l.b16 %v154
      %v235 = vunpack.c.l.b16 %v155
      %v236 = vunpack.c.l.b16 %v156
      %v237 = vunpack.c.l.b16 %v157
      %v238 = vunpack.c.l.b16 %v158
      %v239 = vunpack.c.l.b16 %v159
      %v240 = vunpack.c.l.b16 %v160
      %v241 = vunpack.c.l.b16 %v161
      %v242 = vunpack.c.l.b16 %v162
      %v243 = vunpack.c.l.b16 %v163
      %v244 = vunpack.c.l.b16 %v164
      %v245 = vunpack.c.l.b16 %v165
      %v246 = vunpack.c.l.b16 %v166
      %v247 = vunpack.c.l.b16 %v167
      %v248 = vunpack.c.l.b16 %v168
      %v249 = vunpack.c.l.b16 %v169
      %v250 = vunpack.c.l.b16 %v170
      %v251 = vunpack.c.l.b16 %v171
      %v252 = vunpack.c.l.b16 %v172
      %v253 = vunpack.c.l.b16 %v173
      %v254 = vunpack.c.l.b16 %v174
      %v255 = vunpack.c.l.b16 %v175
      %v256 = vunpack.c.l.b16 %v176
      %v257 = vunpack.c.l.b16 %v177
      %v258 = vunpack.c.l.b16 %v178
      %v259 = vunpack.c.l.b16 %v179
      %v260 = vpack.c.b16 %v229, %v228
      %v261 = vpack.c.b16 %v231, %v230
      %v262 = vpack.c.b16 %v233, %v232
      %v263 = vpack.c.b16 %v235, %v234
      %v264 = vpack.c.b16 %v237, %v236
      %v265 = vpack.c.b16 %v239, %v238
      %v266 = vpack.c.b16 %v241, %v240
      %v267 = vpack.c.b16 %v243, %v242
      %v268 = vpack.c.b16 %v245, %v244
      %v269 = vpack.c.b16 %v247, %v246
      %v270 = vpack.c.b16 %v249, %v248
      %v271 = vpack.c.b16 %v251, %v250
      %v272 = vpack.c.b16 %v253, %v252
      %v273 = vpack.c.b16 %v255, %v254
      %v274 = vpack.c.b16 %v257, %v256
      %v275 = vpack.c.b16 %v259, %v258
      %v308 = vunpack.c.l.b16 %v180
      %v309 = vunpack.c.l.b16 %v181
      %v310 = vunpack.c.l.b16 %v182
      %v311 = vunpack.c.l.b16 %v183
      %v312 = vunpack.c.l.b16 %v184
      %v313 = vunpack.c.l.b16 %v185
      %v314 = vunpack.c.l.b16 %v186
      %v315 = vunpack.c.l.b16 %v187
      %v316 = vunpack.c.l.b16 %v188
      %v317 = vunpack.c.l.b16 %v189
      %v318 = vunpack.c.l.b16 %v190
      %v319 = vunpack.c.l.b16 %v191
      %v320 = vunpack.c.l.b16 %v192
      %v321 = vunpack.c.l.b16 %v193
      %v322 = vunpack.c.l.b16 %v194
      %v323 = vunpack.c.l.b16 %v195
      %v324 = vpack.c.b16 %v309, %v308
      %v325 = vpack.c.b16 %v311, %v310
      %v326 = vpack.c.b16 %v313, %v312
      %v327 = vpack.c.b16 %v315, %v314
      %v328 = vpack.c.b16 %v317, %v316
      %v329 = vpack.c.b16 %v319, %v318
      %v330 = vpack.c.b16 %v321, %v320
      %v331 = vpack.c.b16 %v323, %v322
      %340 = vmatprep.subr.bf16.mxu0 0
      %341 = vmatpush1.bf16.msra.mxu0 %v331
      %342 = vmatprep.subr.bf16.mxu0 0
      %343 = vmatpush1.bf16.msra.mxu0 %v330
      %344 = vmatprep.subr.bf16.mxu0 0
      %345 = vmatpush1.bf16.msra.mxu0 %v329
      %346 = vmatprep.subr.bf16.mxu0 0
      %347 = vmatpush1.bf16.msra.mxu0 %v328
      %348 = vmatprep.subr.bf16.mxu0 0
      %349 = vmatpush1.bf16.msra.mxu0 %v327
      %350 = vmatprep.subr.bf16.mxu0 0
      %351 = vmatpush1.bf16.msra.mxu0 %v326
      %352 = vmatprep.subr.bf16.mxu0 0
      %353 = vmatpush1.bf16.msra.mxu0 %v325
      %354 = vmatprep.subr.bf16.mxu0 0
      %355 = vmatpush1.bf16.msra.mxu0 %v324
      %356 = vmatprep.subr.bf16.mxu0 0
      %357 = vmatpush2.bf16.msra.mxu0 0
      %358 = vmatprep.subr.bf16.mxu0 0
      %359 = vmatpush2.bf16.msra.mxu0 0
      %360 = vmatprep.subr.bf16.mxu0 0
      %361 = vmatpush2.bf16.msra.mxu0 0
      %362 = vmatprep.subr.bf16.mxu0 0
      %363 = vmatpush2.bf16.msra.mxu0 0
      %364 = vmatprep.subr.bf16.mxu0 0
      %365 = vmatpush2.bf16.msra.mxu0 0
      %366 = vmatprep.subr.bf16.mxu0 0
      %367 = vmatpush2.bf16.msra.mxu0 0
      %368 = vmatprep.subr.bf16.mxu0 0
      %369 = vmatpush2.bf16.msra.mxu0 0
      %370 = vmatprep.subr.bf16.mxu0 0
      %371 = vmatpush2.bf16.msra.mxu0 0
      %372 = vmatprep.mubr.bf16.mxu0 0
      %373 = vmatmul.mubr.bf16.gmra.mxu0 %v260
      %v374 = vpop.f32.mrf.mxu0
      %v375 = vadd.f32 0.0, %v374
      %v376 = vpop.f32.mrf.mxu0
      %v377 = vpop.f32.mrf.mxu0
      %v378 = vadd.f32 0.0, %v377
      %v379 = vpop.f32.mrf.mxu0
      %380 = vmatprep.mubr.bf16.mxu0 0
      %381 = vmatmul.mubr.bf16.gmra.mxu0 %v261
      %v382 = vpop.f32.mrf.mxu0
      %v383 = vadd.f32 0.0, %v382
      %v384 = vpop.f32.mrf.mxu0
      %v385 = vpop.f32.mrf.mxu0
      %v386 = vadd.f32 0.0, %v385
      %v387 = vpop.f32.mrf.mxu0
      %388 = vmatprep.mubr.bf16.mxu0 0
      %389 = vmatmul.mubr.bf16.gmra.mxu0 %v262
      %v390 = vpop.f32.mrf.mxu0
      %v391 = vadd.f32 0.0, %v390
      %v392 = vpop.f32.mrf.mxu0
      %v393 = vpop.f32.mrf.mxu0
      %v394 = vadd.f32 0.0, %v393
      %v395 = vpop.f32.mrf.mxu0
      %396 = vmatprep.mubr.bf16.mxu0 0
      %397 = vmatmul.mubr.bf16.gmra.mxu0 %v263
      %v398 = vpop.f32.mrf.mxu0
      %v399 = vadd.f32 0.0, %v398
      %v400 = vpop.f32.mrf.mxu0
      %v401 = vpop.f32.mrf.mxu0
      %v402 = vadd.f32 0.0, %v401
      %v403 = vpop.f32.mrf.mxu0
      %404 = vmatprep.mubr.bf16.mxu0 0
      %405 = vmatmul.mubr.bf16.gmra.mxu0 %v264
      %v406 = vpop.f32.mrf.mxu0
      %v407 = vadd.f32 0.0, %v406
      %v408 = vpop.f32.mrf.mxu0
      %v409 = vpop.f32.mrf.mxu0
      %v410 = vadd.f32 0.0, %v409
      %v411 = vpop.f32.mrf.mxu0
      %412 = vmatprep.mubr.bf16.mxu0 0
      %413 = vmatmul.mubr.bf16.gmra.mxu0 %v265
      %v414 = vpop.f32.mrf.mxu0
      %v415 = vadd.f32 0.0, %v414
      %v416 = vpop.f32.mrf.mxu0
      %v417 = vpop.f32.mrf.mxu0
      %v418 = vadd.f32 0.0, %v417
      %v419 = vpop.f32.mrf.mxu0
      %420 = vmatprep.mubr.bf16.mxu0 0
      %421 = vmatmul.mubr.bf16.gmra.mxu0 %v266
      %v422 = vpop.f32.mrf.mxu0
      %v423 = vadd.f32 0.0, %v422
      %v424 = vpop.f32.mrf.mxu0
      %v425 = vpop.f32.mrf.mxu0
      %v426 = vadd.f32 0.0, %v425
      %v427 = vpop.f32.mrf.mxu0
      %428 = vmatprep.mubr.bf16.mxu0 0
      %429 = vmatmul.mubr.bf16.gmra.mxu0 %v267
      %v430 = vpop.f32.mrf.mxu0
      %v431 = vadd.f32 0.0, %v430
      %v432 = vpop.f32.mrf.mxu0
      %v433 = vpop.f32.mrf.mxu0
      %v434 = vadd.f32 0.0, %v433
      %v435 = vpop.f32.mrf.mxu0
      %436 = vmatprep.mubr.bf16.mxu0 0
      %437 = vmatmul.mubr.bf16.gmra.mxu0 %v268
      %v438 = vpop.f32.mrf.mxu0
      %v439 = vadd.f32 0.0, %v438
      %v440 = vpop.f32.mrf.mxu0
      %v441 = vpop.f32.mrf.mxu0
      %v442 = vadd.f32 0.0, %v441
      %v443 = vpop.f32.mrf.mxu0
      %444 = vmatprep.mubr.bf16.mxu0 0
      %445 = vmatmul.mubr.bf16.gmra.mxu0 %v269
      %v446 = vpop.f32.mrf.mxu0
      %v447 = vadd.f32 0.0, %v446
      %v448 = vpop.f32.mrf.mxu0
      %v449 = vpop.f32.mrf.mxu0
      %v450 = vadd.f32 0.0, %v449
      %v451 = vpop.f32.mrf.mxu0
      %452 = vmatprep.mubr.bf16.mxu0 0
      %453 = vmatmul.mubr.bf16.gmra.mxu0 %v270
      %v454 = vpop.f32.mrf.mxu0
      %v455 = vadd.f32 0.0, %v454
      %v456 = vpop.f32.mrf.mxu0
      %v457 = vpop.f32.mrf.mxu0
      %v458 = vadd.f32 0.0, %v457
      %v459 = vpop.f32.mrf.mxu0
      %460 = vmatprep.mubr.bf16.mxu0 0
      %461 = vmatmul.mubr.bf16.gmra.mxu0 %v271
      %v462 = vpop.f32.mrf.mxu0
      %v463 = vadd.f32 0.0, %v462
      %v464 = vpop.f32.mrf.mxu0
      %v465 = vpop.f32.mrf.mxu0
      %v466 = vadd.f32 0.0, %v465
      %v467 = vpop.f32.mrf.mxu0
      %468 = vmatprep.mubr.bf16.mxu0 0
      %469 = vmatmul.mubr.bf16.gmra.mxu0 %v272
      %v470 = vpop.f32.mrf.mxu0
      %v471 = vadd.f32 0.0, %v470
      %v472 = vpop.f32.mrf.mxu0
      %v473 = vpop.f32.mrf.mxu0
      %v474 = vadd.f32 0.0, %v473
      %v475 = vpop.f32.mrf.mxu0
      %476 = vmatprep.mubr.bf16.mxu0 0
      %477 = vmatmul.mubr.bf16.gmra.mxu0 %v273
      %v478 = vpop.f32.mrf.mxu0
      %v479 = vadd.f32 0.0, %v478
      %v480 = vpop.f32.mrf.mxu0
      %v481 = vpop.f32.mrf.mxu0
      %v482 = vadd.f32 0.0, %v481
      %v483 = vpop.f32.mrf.mxu0
      %484 = vmatprep.mubr.bf16.mxu0 0
      %485 = vmatmul.mubr.bf16.gmra.mxu0 %v274
      %v486 = vpop.f32.mrf.mxu0
      %v487 = vadd.f32 0.0, %v486
      %v488 = vpop.f32.mrf.mxu0
      %v489 = vpop.f32.mrf.mxu0
      %v490 = vadd.f32 0.0, %v489
      %v491 = vpop.f32.mrf.mxu0
      %492 = vmatprep.mubr.bf16.mxu0 0
      %493 = vmatmul.mubr.bf16.gmra.mxu0 %v275
      %v494 = vpop.f32.mrf.mxu0
      %v495 = vadd.f32 0.0, %v494
      %v496 = vpop.f32.mrf.mxu0
      %v497 = vpop.f32.mrf.mxu0
      %v498 = vadd.f32 0.0, %v497
      %v499 = vpop.f32.mrf.mxu0
      %500 = vdwg.mxu0
      %vm501 = vcmp.ge.f32.partialorder %v375, 0.0
      %vm502 = vcmp.ge.f32.partialorder %v378, 0.0
      %vm503 = vcmp.ge.f32.partialorder %v383, 0.0
      %vm504 = vcmp.ge.f32.partialorder %v386, 0.0
      %vm505 = vcmp.ge.f32.partialorder %v391, 0.0
      %vm506 = vcmp.ge.f32.partialorder %v394, 0.0
      %vm507 = vcmp.ge.f32.partialorder %v399, 0.0
      %vm508 = vcmp.ge.f32.partialorder %v402, 0.0
      %vm509 = vcmp.ge.f32.partialorder %v407, 0.0
      %vm510 = vcmp.ge.f32.partialorder %v410, 0.0
      %vm511 = vcmp.ge.f32.partialorder %v415, 0.0
      %vm512 = vcmp.ge.f32.partialorder %v418, 0.0
      %vm513 = vcmp.ge.f32.partialorder %v423, 0.0
      %vm514 = vcmp.ge.f32.partialorder %v426, 0.0
      %vm515 = vcmp.ge.f32.partialorder %v431, 0.0
      %vm516 = vcmp.ge.f32.partialorder %v434, 0.0
      %vm517 = vcmp.ge.f32.partialorder %v439, 0.0
      %vm518 = vcmp.ge.f32.partialorder %v442, 0.0
      %vm519 = vcmp.ge.f32.partialorder %v447, 0.0
      %vm520 = vcmp.ge.f32.partialorder %v450, 0.0
      %vm521 = vcmp.ge.f32.partialorder %v455, 0.0
      %vm522 = vcmp.ge.f32.partialorder %v458, 0.0
      %vm523 = vcmp.ge.f32.partialorder %v463, 0.0
      %vm524 = vcmp.ge.f32.partialorder %v466, 0.0
      %vm525 = vcmp.ge.f32.partialorder %v471, 0.0
      %vm526 = vcmp.ge.f32.partialorder %v474, 0.0
      %vm527 = vcmp.ge.f32.partialorder %v479, 0.0
      %vm528 = vcmp.ge.f32.partialorder %v482, 0.0
      %vm529 = vcmp.ge.f32.partialorder %v487, 0.0
      %vm530 = vcmp.ge.f32.partialorder %v490, 0.0
      %vm531 = vcmp.ge.f32.partialorder %v495, 0.0
      %vm532 = vcmp.ge.f32.partialorder %v498, 0.0
      %v533 = vmul.f32 %v375, 0.2
      %v534 = vmul.f32 %v378, 0.2
      %v535 = vmul.f32 %v383, 0.2
      %v536 = vmul.f32 %v386, 0.2
      %v537 = vmul.f32 %v391, 0.2
      %v538 = vmul.f32 %v394, 0.2
      %v539 = vmul.f32 %v399, 0.2
      %v540 = vmul.f32 %v402, 0.2
      %v541 = vmul.f32 %v407, 0.2
      %v542 = vmul.f32 %v410, 0.2
      %v543 = vmul.f32 %v415, 0.2
      %v544 = vmul.f32 %v418, 0.2
      %v545 = vmul.f32 %v423, 0.2
      %v546 = vmul.f32 %v426, 0.2
      %v547 = vmul.f32 %v431, 0.2
      %v548 = vmul.f32 %v434, 0.2
      %v549 = vmul.f32 %v439, 0.2
      %v550 = vmul.f32 %v442, 0.2
      %v551 = vmul.f32 %v447, 0.2
      %v552 = vmul.f32 %v450, 0.2
      %v553 = vmul.f32 %v455, 0.2
      %v554 = vmul.f32 %v458, 0.2
      %v555 = vmul.f32 %v463, 0.2
      %v556 = vmul.f32 %v466, 0.2
      %v557 = vmul.f32 %v471, 0.2
      %v558 = vmul.f32 %v474, 0.2
      %v559 = vmul.f32 %v479, 0.2
      %v560 = vmul.f32 %v482, 0.2
      %v561 = vmul.f32 %v487, 0.2
      %v562 = vmul.f32 %v490, 0.2
      %v563 = vmul.f32 %v495, 0.2
      %v564 = vmul.f32 %v498, 0.2
      %v565 = vsel %vm501, %v375, %v533
      %v566 = vsel %vm502, %v378, %v534
      %v567 = vsel %vm503, %v383, %v535
      %v568 = vsel %vm504, %v386, %v536
      %v569 = vsel %vm505, %v391, %v537
      %v570 = vsel %vm506, %v394, %v538
      %v571 = vsel %vm507, %v399, %v539
      %v572 = vsel %vm508, %v402, %v540
      %v573 = vsel %vm509, %v407, %v541
      %v574 = vsel %vm510, %v410, %v542
      %v575 = vsel %vm511, %v415, %v543
      %v576 = vsel %vm512, %v418, %v544
      %v577 = vsel %vm513, %v423, %v545
      %v578 = vsel %vm514, %v426, %v546
      %v579 = vsel %vm515, %v431, %v547
      %v580 = vsel %vm516, %v434, %v548
      %v581 = vsel %vm517, %v439, %v549
      %v582 = vsel %vm518, %v442, %v550
      %v583 = vsel %vm519, %v447, %v551
      %v584 = vsel %vm520, %v450, %v552
      %v585 = vsel %vm521, %v455, %v553
      %v586 = vsel %vm522, %v458, %v554
      %v587 = vsel %vm523, %v463, %v555
      %v588 = vsel %vm524, %v466, %v556
      %v589 = vsel %vm525, %v471, %v557
      %v590 = vsel %vm526, %v474, %v558
      %v591 = vsel %vm527, %v479, %v559
      %v592 = vsel %vm528, %v482, %v560
      %v593 = vsel %vm529, %v487, %v561
      %v594 = vsel %vm530, %v490, %v562
      %v595 = vsel %vm531, %v495, %v563
      %v596 = vsel %vm532, %v498, %v564
      %v597 = vpack.c.bf16 %v566, %v565
      %v598 = vpack.c.bf16 %v568, %v567
      %v599 = vpack.c.bf16 %v570, %v569
      %v600 = vpack.c.bf16 %v572, %v571
      %v601 = vpack.c.bf16 %v574, %v573
      %v602 = vpack.c.bf16 %v576, %v575
      %v603 = vpack.c.bf16 %v578, %v577
      %v604 = vpack.c.bf16 %v580, %v579
      %v605 = vpack.c.bf16 %v582, %v581
      %v606 = vpack.c.bf16 %v584, %v583
      %v607 = vpack.c.bf16 %v586, %v585
      %v608 = vpack.c.bf16 %v588, %v587
      %v609 = vpack.c.bf16 %v590, %v589
      %v610 = vpack.c.bf16 %v592, %v591
      %v611 = vpack.c.bf16 %v594, %v593
      %v612 = vpack.c.bf16 %v596, %v595
      %v629 = vunpack.c.l.b16 %v597
      %v630 = vunpack.c.h.b16 %v597
      %v631 = vunpack.c.l.b16 %v598
      %v632 = vunpack.c.h.b16 %v598
      %v633 = vunpack.c.l.b16 %v599
      %v634 = vunpack.c.h.b16 %v599
      %v635 = vunpack.c.l.b16 %v600
      %v636 = vunpack.c.h.b16 %v600
      %v637 = vunpack.c.l.b16 %v601
      %v638 = vunpack.c.h.b16 %v601
      %v639 = vunpack.c.l.b16 %v602
      %v640 = vunpack.c.h.b16 %v602
      %v641 = vunpack.c.l.b16 %v603
      %v642 = vunpack.c.h.b16 %v603
      %v643 = vunpack.c.l.b16 %v604
      %v644 = vunpack.c.h.b16 %v604
      %v645 = vunpack.c.l.b16 %v605
      %v646 = vunpack.c.h.b16 %v605
      %v647 = vunpack.c.l.b16 %v606
      %v648 = vunpack.c.h.b16 %v606
      %v649 = vunpack.c.l.b16 %v607
      %v650 = vunpack.c.h.b16 %v607
      %v651 = vunpack.c.l.b16 %v608
      %v652 = vunpack.c.h.b16 %v608
      %v653 = vunpack.c.l.b16 %v609
      %v654 = vunpack.c.h.b16 %v609
      %v655 = vunpack.c.l.b16 %v610
      %v656 = vunpack.c.h.b16 %v610
      %v657 = vunpack.c.l.b16 %v611
      %v658 = vunpack.c.h.b16 %v611
      %v659 = vunpack.c.l.b16 %v612
      %v660 = vunpack.c.h.b16 %v612
      %v661 = vpack.c.b16 %v629, %v629
      %v662 = vpack.c.b16 %v630, %v630
      %v663 = vpack.c.b16 %v631, %v631
      %v664 = vpack.c.b16 %v632, %v632
      %v665 = vpack.c.b16 %v633, %v633
      %v666 = vpack.c.b16 %v634, %v634
      %v667 = vpack.c.b16 %v635, %v635
      %v668 = vpack.c.b16 %v636, %v636
      %v669 = vpack.c.b16 %v637, %v637
      %v670 = vpack.c.b16 %v638, %v638
      %v671 = vpack.c.b16 %v639, %v639
      %v672 = vpack.c.b16 %v640, %v640
      %v673 = vpack.c.b16 %v641, %v641
      %v674 = vpack.c.b16 %v642, %v642
      %v675 = vpack.c.b16 %v643, %v643
      %v676 = vpack.c.b16 %v644, %v644
      %v677 = vpack.c.b16 %v645, %v645
      %v678 = vpack.c.b16 %v646, %v646
      %v679 = vpack.c.b16 %v647, %v647
      %v680 = vpack.c.b16 %v648, %v648
      %v681 = vpack.c.b16 %v649, %v649
      %v682 = vpack.c.b16 %v650, %v650
      %v683 = vpack.c.b16 %v651, %v651
      %v684 = vpack.c.b16 %v652, %v652
      %v685 = vpack.c.b16 %v653, %v653
      %v686 = vpack.c.b16 %v654, %v654
      %v687 = vpack.c.b16 %v655, %v655
      %v688 = vpack.c.b16 %v656, %v656
      %v689 = vpack.c.b16 %v657, %v657
      %v690 = vpack.c.b16 %v658, %v658
      %v691 = vpack.c.b16 %v659, %v659
      %v692 = vpack.c.b16 %v660, %v660
      %725 = vst [vmem:[%s145] sm:$0xf] %v661
      %726 = vst [vmem:[%s145 + $0x4] sm:$0xf] %v662
      %727 = vst [vmem:[%s145 + $0x8] sm:$0xf] %v663
      %728 = vst [vmem:[%s145 + $0xc] sm:$0xf] %v664
      %729 = vst [vmem:[%s145 + $0x10] sm:$0xf] %v665
      %730 = vst [vmem:[%s145 + $0x14] sm:$0xf] %v666
      %731 = vst [vmem:[%s145 + $0x18] sm:$0xf] %v667
      %732 = vst [vmem:[%s145 + $0x1c] sm:$0xf] %v668
      %733 = vst [vmem:[%s145 + $0x20] sm:$0xf] %v669
      %734 = vst [vmem:[%s145 + $0x24] sm:$0xf] %v670
      %735 = vst [vmem:[%s145 + $0x28] sm:$0xf] %v671
      %736 = vst [vmem:[%s145 + $0x2c] sm:$0xf] %v672
      %737 = vst [vmem:[%s145 + $0x30] sm:$0xf] %v673
      %738 = vst [vmem:[%s145 + $0x34] sm:$0xf] %v674
      %739 = vst [vmem:[%s145 + $0x38] sm:$0xf] %v675
      %740 = vst [vmem:[%s145 + $0x3c] sm:$0xf] %v676
      %741 = vst [vmem:[%s145 + $0x40] sm:$0xf] %v677
      %742 = vst [vmem:[%s145 + $0x44] sm:$0xf] %v678
      %743 = vst [vmem:[%s145 + $0x48] sm:$0xf] %v679
      %744 = vst [vmem:[%s145 + $0x4c] sm:$0xf] %v680
      %745 = vst [vmem:[%s145 + $0x50] sm:$0xf] %v681
      %746 = vst [vmem:[%s145 + $0x54] sm:$0xf] %v682
      %747 = vst [vmem:[%s145 + $0x58] sm:$0xf] %v683
      %748 = vst [vmem:[%s145 + $0x5c] sm:$0xf] %v684
      %749 = vst [vmem:[%s145 + $0x60] sm:$0xf] %v685
      %750 = vst [vmem:[%s145 + $0x64] sm:$0xf] %v686
      %751 = vst [vmem:[%s145 + $0x68] sm:$0xf] %v687
      %752 = vst [vmem:[%s145 + $0x6c] sm:$0xf] %v688
      %753 = vst [vmem:[%s145 + $0x70] sm:$0xf] %v689
      %754 = vst [vmem:[%s145 + $0x74] sm:$0xf] %v690
      %755 = vst [vmem:[%s145 + $0x78] sm:$0xf] %v691
      %756 = vst [vmem:[%s145 + $0x7c] sm:$0xf] %v692
      %s757 = smul.u32 32, %s13
      %p758 = scmp.lt.s32.totalorder %s757, 63
      %s759 = scalar_select %p758, %s757, 63
      %s760 = smul.addr %s759, 4
      %s761 = scalar_lea.vmem %s2, %s760
      // Predicated region
      $region29: #{pix2pix_discriminator.5} parent=27 // pred_check
        %p762 = pneg %p78
      $region30: #{pix2pix_discriminator.5} parent=27 // pred_check_branch
        %764 = sbr.rel (%p762) target = $region32
      $region31: #{pix2pix_discriminator.5} parent=27 // pred_region
        %s765 = smul.u32 32, %s13
      $region32: #{pix2pix_discriminator.5} parent=27 // pred_fallthru
        _
    $region28: #{pix2pix_discriminator.5} parent=5 // pred_fallthru
      _
    %p766 = scmp.le.s32.totalorder 2, %s8
    // Predicated region
    $region33: #{pix2pix_discriminator.5} parent=5 // pred_check
      %p767 = pneg %p766
    $region34: #{pix2pix_discriminator.5} parent=5 // pred_check_branch
      %769 = sbr.rel (%p767) target = $region36
    $region35: #{pix2pix_discriminator.5} parent=5 // pred_region
      %s770 = ssub.s32 %s8, 2
      // Predicated region
      $region37: #{pix2pix_discriminator.5} parent=35 // pred_check
        %p771 = pneg %p84
      $region38: #{pix2pix_discriminator.5} parent=35 // pred_check_branch
        %773 = sbr.rel (%p771) target = $region40
      $region39: #{pix2pix_discriminator.5} parent=35 // pred_region
        %s774 = smul.u32 32, %s14
        %p775 = scmp.lt.s32.totalorder %s774, 63
        %s776 = scalar_select %p775, %s774, 63
        %s777 = smul.addr %s776, 4
        %s778 = scalar_lea.vmem %s2, %s777
      $region40: #{pix2pix_discriminator.5} parent=35 // pred_fallthru
        _
    $region36: #{pix2pix_discriminator.5} parent=5 // pred_fallthru
      _
  $region6: #{pix2pix_discriminator.5} parent=0 // loop_footer
    %s12 = sadd.s32 1, %s8
  $region7: #{pix2pix_discriminator.5} parent=0 // loop_footer_branch
    %7 = sbr.rel target = $region3
  $region8: #{pix2pix_discriminator.5} parent=0 // loop_exit
    _

// kernel: pix2pix_discriminator.6
$region0: #{pix2pix_discriminator.6}
  #allocation0 [shape = 'u32[]', space=smem, size = 0x4, offset = 0x4, fixed_abs, tag = 'smem constant byte address 0x4 - core index']
  #allocation1 [shape = 'u32[144,128]{1,0:T(1,128)}', space=vmem, size = 0x12000, scoped, tag = 'internal scratch']
  #allocation2 [shape = 'f32[128,128]{1,0:T(8,128)}', space=vmem, size = 0x10000, scoped, tag = 'scratch operand']
  %s0 = inlined_call_operand.vmem [shape: bf16[128,128], index: 0, kind: input, shape index: {}]
  %s1 = inlined_call_operand.vmem [shape: bf16[128,128], index: 1, kind: input, shape index: {}]
  %s2 = inlined_call_operand.vmem [shape: bf16[128,128], index: 2, kind: output, shape index: {}]
  %s3 = sld [smem:[#allocation0]]
  $region22: #{pix2pix_discriminator.6} parent=0
    _
  %s5 = ssub.s32 1, %s3
  %s6 = scalar_select 0, %s5, %s3
  // Predicated region
  $region2: #{pix2pix_discriminator.6} parent=0 // pred_check
    _
  $region3: #{pix2pix_discriminator.6} parent=0 // pred_check_branch
    %8 = sbr.rel (0) target = $region5
  $region4: #{pix2pix_discriminator.6} parent=0 // pred_region
    _
  $region5: #{pix2pix_discriminator.6} parent=0 // pred_fallthru
    _
  // Predicated region
  $region6: #{pix2pix_discriminator.6} parent=0 // pred_check
    _
  $region7: #{pix2pix_discriminator.6} parent=0 // pred_check_branch
    %10 = sbr.rel (0) target = $region9
  $region8: #{pix2pix_discriminator.6} parent=0 // pred_region
    _
  $region9: #{pix2pix_discriminator.6} parent=0 // pred_fallthru
    _
  %v12 = vld [vmem:[%s0] sm:$0xf]
  %v13 = vld [vmem:[%s0 + $0x4] sm:$0xf]
  %v14 = vld [vmem:[%s0 + $0x8] sm:$0xf]
  %v15 = vld [vmem:[%s0 + $0xc] sm:$0xf]
  %v16 = vld [vmem:[%s0 + $0x10] sm:$0xf]
  %v17 = vld [vmem:[%s0 + $0x14] sm:$0xf]
  %v18 = vld [vmem:[%s0 + $0x18] sm:$0xf]
  %v19 = vld [vmem:[%s0 + $0x1c] sm:$0xf]
  %v20 = vld [vmem:[%s0 + $0x20] sm:$0xf]
  %v21 = vld [vmem:[%s0 + $0x24] sm:$0xf]
  %v22 = vld [vmem:[%s0 + $0x28] sm:$0xf]
  %v23 = vld [vmem:[%s0 + $0x2c] sm:$0xf]
  %v24 = vld [vmem:[%s0 + $0x30] sm:$0xf]
  %v25 = vld [vmem:[%s0 + $0x34] sm:$0xf]
  %v26 = vld [vmem:[%s0 + $0x38] sm:$0xf]
  %v27 = vld [vmem:[%s0 + $0x3c] sm:$0xf]
  %v28 = vld [vmem:[%s1] sm:$0xf]
  %v29 = vld [vmem:[%s1 + $0x4] sm:$0xf]
  %v30 = vld [vmem:[%s1 + $0x8] sm:$0xf]
  %v31 = vld [vmem:[%s1 + $0xc] sm:$0xf]
  %v32 = vld [vmem:[%s1 + $0x10] sm:$0xf]
  %v33 = vld [vmem:[%s1 + $0x14] sm:$0xf]
  %v34 = vld [vmem:[%s1 + $0x18] sm:$0xf]
  %v35 = vld [vmem:[%s1 + $0x1c] sm:$0xf]
  %v36 = vld [vmem:[%s1 + $0x20] sm:$0xf]
  %v37 = vld [vmem:[%s1 + $0x24] sm:$0xf]
  %v38 = vld [vmem:[%s1 + $0x28] sm:$0xf]
  %v39 = vld [vmem:[%s1 + $0x2c] sm:$0xf]
  %v40 = vld [vmem:[%s1 + $0x30] sm:$0xf]
  %v41 = vld [vmem:[%s1 + $0x34] sm:$0xf]
  %v42 = vld [vmem:[%s1 + $0x38] sm:$0xf]
  %v43 = vld [vmem:[%s1 + $0x3c] sm:$0xf]
  %v60 = vunpack.c.l.b16 %v12
  %v61 = vunpack.c.l.b16 %v13
  %v62 = vunpack.c.l.b16 %v14
  %v63 = vunpack.c.l.b16 %v15
  %v64 = vunpack.c.l.b16 %v16
  %v65 = vunpack.c.l.b16 %v17
  %v66 = vunpack.c.l.b16 %v18
  %v67 = vunpack.c.l.b16 %v19
  %v68 = vunpack.c.l.b16 %v20
  %v69 = vunpack.c.l.b16 %v21
  %v70 = vunpack.c.l.b16 %v22
  %v71 = vunpack.c.l.b16 %v23
  %v72 = vunpack.c.l.b16 %v24
  %v73 = vunpack.c.l.b16 %v25
  %v74 = vunpack.c.l.b16 %v26
  %v75 = vunpack.c.l.b16 %v27
  %v76 = vpack.c.b16 %v61, %v60
  %v77 = vpack.c.b16 %v63, %v62
  %v78 = vpack.c.b16 %v65, %v64
  %v79 = vpack.c.b16 %v67, %v66
  %v80 = vpack.c.b16 %v69, %v68
  %v81 = vpack.c.b16 %v71, %v70
  %v82 = vpack.c.b16 %v73, %v72
  %v83 = vpack.c.b16 %v75, %v74
  %v108 = vunpack.c.l.b16 %v28
  %v109 = vunpack.c.l.b16 %v29
  %v110 = vunpack.c.l.b16 %v30
  %v111 = vunpack.c.l.b16 %v31
  %v112 = vunpack.c.l.b16 %v32
  %v113 = vunpack.c.l.b16 %v33
  %v114 = vunpack.c.l.b16 %v34
  %v115 = vunpack.c.l.b16 %v35
  %v116 = vunpack.c.l.b16 %v36
  %v117 = vunpack.c.l.b16 %v37
  %v118 = vunpack.c.l.b16 %v38
  %v119 = vunpack.c.l.b16 %v39
  %v120 = vunpack.c.l.b16 %v40
  %v121 = vunpack.c.l.b16 %v41
  %v122 = vunpack.c.l.b16 %v42
  %v123 = vunpack.c.l.b16 %v43
  %v124 = vpack.c.b16 %v109, %v108
  %v125 = vpack.c.b16 %v111, %v110
  %v126 = vpack.c.b16 %v113, %v112
  %v127 = vpack.c.b16 %v115, %v114
  %v128 = vpack.c.b16 %v117, %v116
  %v129 = vpack.c.b16 %v119, %v118
  %v130 = vpack.c.b16 %v121, %v120
  %v131 = vpack.c.b16 %v123, %v122
  %140 = vmatprep.subr.bf16.mxu0 0
  %141 = vmatpush1.bf16.msra.mxu0 %v131
  %142 = vmatprep.subr.bf16.mxu0 0
  %143 = vmatpush1.bf16.msra.mxu0 %v130
  %144 = vmatprep.subr.bf16.mxu0 0
  %145 = vmatpush1.bf16.msra.mxu0 %v129
  %146 = vmatprep.subr.bf16.mxu0 0
  %147 = vmatpush1.bf16.msra.mxu0 %v128
  %148 = vmatprep.subr.bf16.mxu0 0
  %149 = vmatpush1.bf16.msra.mxu0 %v127
  %150 = vmatprep.subr.bf16.mxu0 0
  %151 = vmatpush1.bf16.msra.mxu0 %v126
  %152 = vmatprep.subr.bf16.mxu0 0
  %153 = vmatpush1.bf16.msra.mxu0 %v125
  %154 = vmatprep.subr.bf16.mxu0 0
  %155 = vmatpush1.bf16.msra.mxu0 %v124
  %156 = vmatprep.subr.bf16.mxu0 0
  %157 = vmatpush2.bf16.msra.mxu0 0
  %158 = vmatprep.subr.bf16.mxu0 0
  %159 = vmatpush2.bf16.msra.mxu0 0
  %160 = vmatprep.subr.bf16.mxu0 0
  %161 = vmatpush2.bf16.msra.mxu0 0
  %162 = vmatprep.subr.bf16.mxu0 0
  %163 = vmatpush2.bf16.msra.mxu0 0
  %164 = vmatprep.subr.bf16.mxu0 0
  %165 = vmatpush2.bf16.msra.mxu0 0
  %166 = vmatprep.subr.bf16.mxu0 0
  %167 = vmatpush2.bf16.msra.mxu0 0
  %168 = vmatprep.subr.bf16.mxu0 0
  %169 = vmatpush2.bf16.msra.mxu0 0
  %170 = vmatprep.subr.bf16.mxu0 0
  %171 = vmatpush2.bf16.msra.mxu0 0
  %172 = vmatprep.mubr.bf16.mxu0 0
  %173 = vmatmul.mubr.bf16.gmra.mxu0 %v76
  %v174 = vpop.f32.mrf.mxu0
  %v175 = vadd.f32 0.0, %v174
  %v176 = vpop.f32.mrf.mxu0
  %v177 = vpop.f32.mrf.mxu0
  %v178 = vadd.f32 0.0, %v177
  %v179 = vpop.f32.mrf.mxu0
  %180 = vmatprep.mubr.bf16.mxu0 0
  %181 = vmatmul.mubr.bf16.gmra.mxu0 %v77
  %v182 = vpop.f32.mrf.mxu0
  %v183 = vadd.f32 0.0, %v182
  %v184 = vpop.f32.mrf.mxu0
  %v185 = vpop.f32.mrf.mxu0
  %v186 = vadd.f32 0.0, %v185
  %v187 = vpop.f32.mrf.mxu0
  %188 = vmatprep.mubr.bf16.mxu0 0
  %189 = vmatmul.mubr.bf16.gmra.mxu0 %v78
  %v190 = vpop.f32.mrf.mxu0
  %v191 = vadd.f32 0.0, %v190
  %v192 = vpop.f32.mrf.mxu0
  %v193 = vpop.f32.mrf.mxu0
  %v194 = vadd.f32 0.0, %v193
  %v195 = vpop.f32.mrf.mxu0
  %196 = vmatprep.mubr.bf16.mxu0 0
  %197 = vmatmul.mubr.bf16.gmra.mxu0 %v79
  %v198 = vpop.f32.mrf.mxu0
  %v199 = vadd.f32 0.0, %v198
  %v200 = vpop.f32.mrf.mxu0
  %v201 = vpop.f32.mrf.mxu0
  %v202 = vadd.f32 0.0, %v201
  %v203 = vpop.f32.mrf.mxu0
  %204 = vmatprep.mubr.bf16.mxu0 0
  %205 = vmatmul.mubr.bf16.gmra.mxu0 %v80
  %v206 = vpop.f32.mrf.mxu0
  %v207 = vadd.f32 0.0, %v206
  %v208 = vpop.f32.mrf.mxu0
  %v209 = vpop.f32.mrf.mxu0
  %v210 = vadd.f32 0.0, %v209
  %v211 = vpop.f32.mrf.mxu0
  %212 = vmatprep.mubr.bf16.mxu0 0
  %213 = vmatmul.mubr.bf16.gmra.mxu0 %v81
  %v214 = vpop.f32.mrf.mxu0
  %v215 = vadd.f32 0.0, %v214
  %v216 = vpop.f32.mrf.mxu0
  %v217 = vpop.f32.mrf.mxu0
  %v218 = vadd.f32 0.0, %v217
  %v219 = vpop.f32.mrf.mxu0
  %220 = vmatprep.mubr.bf16.mxu0 0
  %221 = vmatmul.mubr.bf16.gmra.mxu0 %v82
  %v222 = vpop.f32.mrf.mxu0
  %v223 = vadd.f32 0.0, %v222
  %v224 = vpop.f32.mrf.mxu0
  %v225 = vpop.f32.mrf.mxu0
  %v226 = vadd.f32 0.0, %v225
  %v227 = vpop.f32.mrf.mxu0
  %228 = vmatprep.mubr.bf16.mxu0 0
  %229 = vmatmul.mubr.bf16.gmra.mxu0 %v83
  %v230 = vpop.f32.mrf.mxu0
  %v231 = vadd.f32 0.0, %v230
  %v232 = vpop.f32.mrf.mxu0
  %v233 = vpop.f32.mrf.mxu0
  %v234 = vadd.f32 0.0, %v233
  %v235 = vpop.f32.mrf.mxu0
  %236 = vdwg.mxu0
  %s237 = smul.u32 0, 128
  %s238 = scalar_lea.vmem [#allocation2], %s237
  %239 = vst [vmem:[%s238] sm:$0xff] %v175
  %240 = vst [vmem:[%s238 + $0x8] sm:$0xff] %v178
  %241 = vst [vmem:[%s238 + $0x10] sm:$0xff] %v183
  %242 = vst [vmem:[%s238 + $0x18] sm:$0xff] %v186
  %243 = vst [vmem:[%s238 + $0x20] sm:$0xff] %v191
  %244 = vst [vmem:[%s238 + $0x28] sm:$0xff] %v194
  %245 = vst [vmem:[%s238 + $0x30] sm:$0xff] %v199
  %246 = vst [vmem:[%s238 + $0x38] sm:$0xff] %v202
  %247 = vst [vmem:[%s238 + $0x40] sm:$0xff] %v207
  %248 = vst [vmem:[%s238 + $0x48] sm:$0xff] %v210
  %249 = vst [vmem:[%s238 + $0x50] sm:$0xff] %v215
  %250 = vst [vmem:[%s238 + $0x58] sm:$0xff] %v218
  %251 = vst [vmem:[%s238 + $0x60] sm:$0xff] %v223
  %252 = vst [vmem:[%s238 + $0x68] sm:$0xff] %v226
  %253 = vst [vmem:[%s238 + $0x70] sm:$0xff] %v231
  %254 = vst [vmem:[%s238 + $0x78] sm:$0xff] %v234
  %p255 = scmp.eq.s32.totalorder 0, 0
  // Predicated region
  $region10: #{pix2pix_discriminator.6} parent=0 // pred_check
    %p256 = pneg %p255
  $region11: #{pix2pix_discriminator.6} parent=0 // pred_check_branch
    %258 = sbr.rel (%p256) target = $region13
  $region12: #{pix2pix_discriminator.6} parent=0 // pred_region
    %v259 = vld [vmem:[#allocation2] sm:$0xff]
    %v260 = vld [vmem:[#allocation2 + $0x8] sm:$0xff]
    %v261 = vld [vmem:[#allocation2 + $0x10] sm:$0xff]
    %v262 = vld [vmem:[#allocation2 + $0x18] sm:$0xff]
    %v263 = vld [vmem:[#allocation2 + $0x20] sm:$0xff]
    %v264 = vld [vmem:[#allocation2 + $0x28] sm:$0xff]
    %v265 = vld [vmem:[#allocation2 + $0x30] sm:$0xff]
    %v266 = vld [vmem:[#allocation2 + $0x38] sm:$0xff]
    %v267 = vld [vmem:[#allocation2 + $0x40] sm:$0xff]
    %v268 = vld [vmem:[#allocation2 + $0x48] sm:$0xff]
    %v269 = vld [vmem:[#allocation2 + $0x50] sm:$0xff]
    %v270 = vld [vmem:[#allocation2 + $0x58] sm:$0xff]
    %v271 = vld [vmem:[#allocation2 + $0x60] sm:$0xff]
    %v272 = vld [vmem:[#allocation2 + $0x68] sm:$0xff]
    %v273 = vld [vmem:[#allocation2 + $0x70] sm:$0xff]
    %v274 = vld [vmem:[#allocation2 + $0x78] sm:$0xff]
    %v275 = vadd.f32 %v259, %v260
    %v276 = vadd.f32 %v275, %v261
    %v277 = vadd.f32 %v276, %v262
    %v278 = vadd.f32 %v277, %v263
    %v279 = vadd.f32 %v278, %v264
    %v280 = vadd.f32 %v279, %v265
    %v281 = vadd.f32 %v280, %v266
    %v282 = vadd.f32 %v281, %v267
    %v283 = vadd.f32 %v282, %v268
    %v284 = vadd.f32 %v283, %v269
    %v285 = vadd.f32 %v284, %v270
    %v286 = vadd.f32 %v285, %v271
    %v287 = vadd.f32 %v286, %v272
    %v288 = vadd.f32 %v287, %v273
    %v289 = vadd.f32 %v288, %v274
    %v290 = vrot.slane %v289, 4
    %v291 = vadd.f32 %v289, %v290
    %v292 = vrot.slane %v291, 2
    %v293 = vadd.f32 %v291, %v292
    %v294 = vrot.slane %v293, 1
    %v295 = vadd.f32 %v293, %v294
    %v296 = vmul.f32 %v295, 0.0078125
    %v297 = vsub.f32 %v259, %v296
    %v298 = vsub.f32 %v260, %v296
    %v299 = vsub.f32 %v261, %v296
    %v300 = vsub.f32 %v262, %v296
    %v301 = vsub.f32 %v263, %v296
    %v302 = vsub.f32 %v264, %v296
    %v303 = vsub.f32 %v265, %v296
    %v304 = vsub.f32 %v266, %v296
    %v305 = vsub.f32 %v267, %v296
    %v306 = vsub.f32 %v268, %v296
    %v307 = vsub.f32 %v269, %v296
    %v308 = vsub.f32 %v270, %v296
    %v309 = vsub.f32 %v271, %v296
    %v310 = vsub.f32 %v272, %v296
    %v311 = vsub.f32 %v273, %v296
    %v312 = vsub.f32 %v274, %v296
    %v313 = vmul.f32 %v297, %v297
    %v314 = vmul.f32 %v298, %v298
    %v315 = vmul.f32 %v299, %v299
    %v316 = vmul.f32 %v300, %v300
    %v317 = vmul.f32 %v301, %v301
    %v318 = vmul.f32 %v302, %v302
    %v319 = vmul.f32 %v303, %v303
    %v320 = vmul.f32 %v304, %v304
    %v321 = vmul.f32 %v305, %v305
    %v322 = vmul.f32 %v306, %v306
    %v323 = vmul.f32 %v307, %v307
    %v324 = vmul.f32 %v308, %v308
    %v325 = vmul.f32 %v309, %v309
    %v326 = vmul.f32 %v310, %v310
    %v327 = vmul.f32 %v311, %v311
    %v328 = vmul.f32 %v312, %v312
    %v329 = vadd.f32 %v313, %v314
    %v330 = vadd.f32 %v329, %v315
    %v331 = vadd.f32 %v330, %v316
    %v332 = vadd.f32 %v331, %v317
    %v333 = vadd.f32 %v332, %v318
    %v334 = vadd.f32 %v333, %v319
    %v335 = vadd.f32 %v334, %v320
    %v336 = vadd.f32 %v335, %v321
    %v337 = vadd.f32 %v336, %v322
    %v338 = vadd.f32 %v337, %v323
    %v339 = vadd.f32 %v338, %v324
    %v340 = vadd.f32 %v339, %v325
    %v341 = vadd.f32 %v340, %v326
    %v342 = vadd.f32 %v341, %v327
    %v343 = vadd.f32 %v342, %v328
    %v344 = vrot.slane %v343, 4
    %v345 = vadd.f32 %v343, %v344
    %v346 = vrot.slane %v345, 2
    %v347 = vadd.f32 %v345, %v346
    %v348 = vrot.slane %v347, 1
    %v349 = vadd.f32 %v347, %v348
    %v350 = vmul.f32 %v349, 0.0078125
    %v351 = vmax.f32 %v350, 0.0
    %v352 = vadd.f32 %v351, 1e-05
    %v353 = vrsqrt.pop %v352
    %v354 = vmul.f32 %v297, %v353
    %v355 = vmul.f32 %v298, %v353
    %v356 = vmul.f32 %v299, %v353
    %v357 = vmul.f32 %v300, %v353
    %v358 = vmul.f32 %v301, %v353
    %v359 = vmul.f32 %v302, %v353
    %v360 = vmul.f32 %v303, %v353
    %v361 = vmul.f32 %v304, %v353
    %v362 = vmul.f32 %v305, %v353
    %v363 = vmul.f32 %v306, %v353
    %v364 = vmul.f32 %v307, %v353
    %v365 = vmul.f32 %v308, %v353
    %v366 = vmul.f32 %v309, %v353
    %v367 = vmul.f32 %v310, %v353
    %v368 = vmul.f32 %v311, %v353
    %v369 = vmul.f32 %v312, %v353
    %vm370 = vcmp.ge.f32.partialorder %v354, 0.0
    %vm371 = vcmp.ge.f32.partialorder %v355, 0.0
    %vm372 = vcmp.ge.f32.partialorder %v356, 0.0
    %vm373 = vcmp.ge.f32.partialorder %v357, 0.0
    %vm374 = vcmp.ge.f32.partialorder %v358, 0.0
    %vm375 = vcmp.ge.f32.partialorder %v359, 0.0
    %vm376 = vcmp.ge.f32.partialorder %v360, 0.0
    %vm377 = vcmp.ge.f32.partialorder %v361, 0.0
    %vm378 = vcmp.ge.f32.partialorder %v362, 0.0
    %vm379 = vcmp.ge.f32.partialorder %v363, 0.0
    %vm380 = vcmp.ge.f32.partialorder %v364, 0.0
    %vm381 = vcmp.ge.f32.partialorder %v365, 0.0
    %vm382 = vcmp.ge.f32.partialorder %v366, 0.0
    %vm383 = vcmp.ge.f32.partialorder %v367, 0.0
    %vm384 = vcmp.ge.f32.partialorder %v368, 0.0
    %vm385 = vcmp.ge.f32.partialorder %v369, 0.0
    %v386 = vmul.f32 %v354, 0.2
    %v387 = vmul.f32 %v355, 0.2
    %v388 = vmul.f32 %v356, 0.2
    %v389 = vmul.f32 %v357, 0.2
    %v390 = vmul.f32 %v358, 0.2
    %v391 = vmul.f32 %v359, 0.2
    %v392 = vmul.f32 %v360, 0.2
    %v393 = vmul.f32 %v361, 0.2
    %v394 = vmul.f32 %v362, 0.2
    %v395 = vmul.f32 %v363, 0.2
    %v396 = vmul.f32 %v364, 0.2
    %v397 = vmul.f32 %v365, 0.2
    %v398 = vmul.f32 %v366, 0.2
    %v399 = vmul.f32 %v367, 0.2
    %v400 = vmul.f32 %v368, 0.2
    %v401 = vmul.f32 %v369, 0.2
    %v402 = vsel %vm370, %v354, %v386
    %v403 = vsel %vm371, %v355, %v387
    %v404 = vsel %vm372, %v356, %v388
    %v405 = vsel %vm373, %v357, %v389
    %v406 = vsel %vm374, %v358, %v390
    %v407 = vsel %vm375, %v359, %v391
    %v408 = vsel %vm376, %v360, %v392
    %v409 = vsel %vm377, %v361, %v393
    %v410 = vsel %vm378, %v362, %v394
    %v411 = vsel %vm379, %v363, %v395
    %v412 = vsel %vm380, %v364, %v396
    %v413 = vsel %vm381, %v365, %v397
    %v414 = vsel %vm382, %v366, %v398
    %v415 = vsel %vm383, %v367, %v399
    %v416 = vsel %vm384, %v368, %v400
    %v417 = vsel %vm385, %v369, %v401
    %v418 = vpack.c.bf16 %v403, %v402
    %v419 = vpack.c.bf16 %v405, %v404
    %v420 = vpack.c.bf16 %v407, %v406
    %v421 = vpack.c.bf16 %v409, %v408
    %v422 = vpack.c.bf16 %v411, %v410
    %v423 = vpack.c.bf16 %v413, %v412
    %v424 = vpack.c.bf16 %v415, %v414
    %v425 = vpack.c.bf16 %v417, %v416
    %v434 = vunpack.c.l.b16 %v418
    %v435 = vunpack.c.h.b16 %v418
    %v436 = vunpack.c.l.b16 %v419
    %v437 = vunpack.c.h.b16 %v419
    %v438 = vunpack.c.l.b16 %v420
    %v439 = vunpack.c.h.b16 %v420
    %v440 = vunpack.c.l.b16 %v421
    %v441 = vunpack.c.h.b16 %v421
    %v442 = vunpack.c.l.b16 %v422
    %v443 = vunpack.c.h.b16 %v422
    %v444 = vunpack.c.l.b16 %v423
    %v445 = vunpack.c.h.b16 %v423
    %v446 = vunpack.c.l.b16 %v424
    %v447 = vunpack.c.h.b16 %v424
    %v448 = vunpack.c.l.b16 %v425
    %v449 = vunpack.c.h.b16 %v425
    %v450 = vpack.c.b16 %v434, %v434
    %v451 = vpack.c.b16 %v435, %v435
    %v452 = vpack.c.b16 %v436, %v436
    %v453 = vpack.c.b16 %v437, %v437
    %v454 = vpack.c.b16 %v438, %v438
    %v455 = vpack.c.b16 %v439, %v439
    %v456 = vpack.c.b16 %v440, %v440
    %v457 = vpack.c.b16 %v441, %v441
    %v458 = vpack.c.b16 %v442, %v442
    %v459 = vpack.c.b16 %v443, %v443
    %v460 = vpack.c.b16 %v444, %v444
    %v461 = vpack.c.b16 %v445, %v445
    %v462 = vpack.c.b16 %v446, %v446
    %v463 = vpack.c.b16 %v447, %v447
    %v464 = vpack.c.b16 %v448, %v448
    %v465 = vpack.c.b16 %v449, %v449
    %482 = vst [vmem:[%s2] sm:$0xf] %v450
    %483 = vst [vmem:[%s2 + $0x4] sm:$0xf] %v451
    %484 = vst [vmem:[%s2 + $0x8] sm:$0xf] %v452
    %485 = vst [vmem:[%s2 + $0xc] sm:$0xf] %v453
    %486 = vst [vmem:[%s2 + $0x10] sm:$0xf] %v454
    %487 = vst [vmem:[%s2 + $0x14] sm:$0xf] %v455
    %488 = vst [vmem:[%s2 + $0x18] sm:$0xf] %v456
    %489 = vst [vmem:[%s2 + $0x1c] sm:$0xf] %v457
    %490 = vst [vmem:[%s2 + $0x20] sm:$0xf] %v458
    %491 = vst [vmem:[%s2 + $0x24] sm:$0xf] %v459
    %492 = vst [vmem:[%s2 + $0x28] sm:$0xf] %v460
    %493 = vst [vmem:[%s2 + $0x2c] sm:$0xf] %v461
    %494 = vst [vmem:[%s2 + $0x30] sm:$0xf] %v462
    %495 = vst [vmem:[%s2 + $0x34] sm:$0xf] %v463
    %496 = vst [vmem:[%s2 + $0x38] sm:$0xf] %v464
    %497 = vst [vmem:[%s2 + $0x3c] sm:$0xf] %v465
  $region13: #{pix2pix_discriminator.6} parent=0 // pred_fallthru
    _
  // Predicated region
  $region14: #{pix2pix_discriminator.6} parent=0 // pred_check
    _
  $region15: #{pix2pix_discriminator.6} parent=0 // pred_check_branch
    %499 = sbr.rel (0) target = $region17
  $region16: #{pix2pix_discriminator.6} parent=0 // pred_region
    _
  $region17: #{pix2pix_discriminator.6} parent=0 // pred_fallthru
    _
  // Predicated region
  $region18: #{pix2pix_discriminator.6} parent=0 // pred_check
    _
  $region19: #{pix2pix_discriminator.6} parent=0 // pred_check_branch
    %501 = sbr.rel (0) target = $region21
  $region20: #{pix2pix_discriminator.6} parent=0 // pred_region
    _
  $region21: #{pix2pix_discriminator.6} parent=0 // pred_fallthru
    _

// kernel: pix2pix_discriminator.7
$region0: #{pix2pix_discriminator.7}
  #allocation0 [shape = 'u32[]', space=smem, size = 0x4, offset = 0x4, fixed_abs, tag = 'smem constant byte address 0x4 - core index']
  #allocation1 [shape = 'u32[144,128]{1,0:T(1,128)}', space=vmem, size = 0x12000, scoped, tag = 'internal scratch']
  #allocation2 [shape = 'f32[32,128]{1,0:T(8,128)}', space=vmem, size = 0x4000, scoped, tag = 'scratch operand']
  %s0 = inlined_call_operand.vmem [shape: bf16[32,256], index: 0, kind: input, shape index: {}]
  %s1 = inlined_call_operand.vmem [shape: bf16[256,128], index: 1, kind: input, shape index: {}]
  %s2 = inlined_call_operand.vmem [shape: bf16[32,128], index: 2, kind: output, shape index: {}]
  %s3 = sld [smem:[#allocation0]]
  $region22: #{pix2pix_discriminator.7} parent=0
    _
  %s5 = ssub.s32 1, %s3
  %s6 = scalar_select 0, %s5, %s3
  // Predicated region
  $region2: #{pix2pix_discriminator.7} parent=0 // pred_check
    _
  $region3: #{pix2pix_discriminator.7} parent=0 // pred_check_branch
    %8 = sbr.rel (0) target = $region5
  $region4: #{pix2pix_discriminator.7} parent=0 // pred_region
    _
  $region5: #{pix2pix_discriminator.7} parent=0 // pred_fallthru
    _
  // Predicated region
  $region6: #{pix2pix_discriminator.7} parent=0 // pred_check
    _
  $region7: #{pix2pix_discriminator.7} parent=0 // pred_check_branch
    %10 = sbr.rel (0) target = $region9
  $region8: #{pix2pix_discriminator.7} parent=0 // pred_region
    _
  $region9: #{pix2pix_discriminator.7} parent=0 // pred_fallthru
    _
  %v12 = vld [vmem:[%s0] sm:$0xff]
  %v13 = vld [vmem:[%s0 + $0x8] sm:$0xff]
  %v14 = vld [vmem:[%s0 + $0x10] sm:$0xff]
  %v15 = vld [vmem:[%s0 + $0x18] sm:$0xff]
  %v16 = vld [vmem:[%s1] sm:$0xf]
  %v17 = vld [vmem:[%s1 + $0x4] sm:$0xf]
  %v18 = vld [vmem:[%s1 + $0x8] sm:$0xf]
  %v19 = vld [vmem:[%s1 + $0xc] sm:$0xf]
  %v20 = vld [vmem:[%s1 + $0x10] sm:$0xf]
  %v21 = vld [vmem:[%s1 + $0x14] sm:$0xf]
  %v22 = vld [vmem:[%s1 + $0x18] sm:$0xf]
  %v23 = vld [vmem:[%s1 + $0x1c] sm:$0xf]
  %v24 = vld [vmem:[%s1 + $0x20] sm:$0xf]
  %v25 = vld [vmem:[%s1 + $0x24] sm:$0xf]
  %v26 = vld [vmem:[%s1 + $0x28] sm:$0xf]
  %v27 = vld [vmem:[%s1 + $0x2c] sm:$0xf]
  %v28 = vld [vmem:[%s1 + $0x30] sm:$0xf]
  %v29 = vld [vmem:[%s1 + $0x34] sm:$0xf]
  %v30 = vld [vmem:[%s1 + $0x38] sm:$0xf]
  %v31 = vld [vmem:[%s1 + $0x3c] sm:$0xf]
  %v32 = vld [vmem:[%s1 + $0x40] sm:$0xf]
  %v33 = vld [vmem:[%s1 + $0x44] sm:$0xf]
  %v34 = vld [vmem:[%s1 + $0x48] sm:$0xf]
  %v35 = vld [vmem:[%s1 + $0x4c] sm:$0xf]
  %v36 = vld [vmem:[%s1 + $0x50] sm:$0xf]
  %v37 = vld [vmem:[%s1 + $0x54] sm:$0xf]
  %v38 = vld [vmem:[%s1 + $0x58] sm:$0xf]
  %v39 = vld [vmem:[%s1 + $0x5c] sm:$0xf]
  %v40 = vld [vmem:[%s1 + $0x60] sm:$0xf]
  %v41 = vld [vmem:[%s1 + $0x64] sm:$0xf]
  %v42 = vld [vmem:[%s1 + $0x68] sm:$0xf]
  %v43 = vld [vmem:[%s1 + $0x6c] sm:$0xf]
  %v44 = vld [vmem:[%s1 + $0x70] sm:$0xf]
  %v45 = vld [vmem:[%s1 + $0x74] sm:$0xf]
  %v46 = vld [vmem:[%s1 + $0x78] sm:$0xf]
  %v47 = vld [vmem:[%s1 + $0x7c] sm:$0xf]
  %v52 = vunpack.c.l.b16 %v12
  %v53 = vunpack.c.h.b16 %v12
  %v54 = vunpack.c.l.b16 %v13
  %v55 = vunpack.c.h.b16 %v13
  %v56 = vunpack.c.l.b16 %v14
  %v57 = vunpack.c.h.b16 %v14
  %v58 = vunpack.c.l.b16 %v15
  %v59 = vunpack.c.h.b16 %v15
  %v60 = vpack.c.b16 %v54, %v52
  %v61 = vpack.c.b16 %v55, %v53
  %v62 = vpack.c.b16 %v58, %v56
  %v63 = vpack.c.b16 %v59, %v57
  %v100 = vunpack.c.l.b16 %v16
  %v101 = vunpack.c.l.b16 %v17
  %v102 = vunpack.c.l.b16 %v18
  %v103 = vunpack.c.l.b16 %v19
  %v104 = vunpack.c.l.b16 %v20
  %v105 = vunpack.c.l.b16 %v21
  %v106 = vunpack.c.l.b16 %v22
  %v107 = vunpack.c.l.b16 %v23
  %v108 = vunpack.c.l.b16 %v24
  %v109 = vunpack.c.l.b16 %v25
  %v110 = vunpack.c.l.b16 %v26
  %v111 = vunpack.c.l.b16 %v27
  %v112 = vunpack.c.l.b16 %v28
  %v113 = vunpack.c.l.b16 %v29
  %v114 = vunpack.c.l.b16 %v30
  %v115 = vunpack.c.l.b16 %v31
  %v116 = vunpack.c.l.b16 %v32
  %v117 = vunpack.c.l.b16 %v33
  %v118 = vunpack.c.l.b16 %v34
  %v119 = vunpack.c.l.b16 %v35
  %v120 = vunpack.c.l.b16 %v36
  %v121 = vunpack.c.l.b16 %v37
  %v122 = vunpack.c.l.b16 %v38
  %v123 = vunpack.c.l.b16 %v39
  %v124 = vunpack.c.l.b16 %v40
  %v125 = vunpack.c.l.b16 %v41
  %v126 = vunpack.c.l.b16 %v42
  %v127 = vunpack.c.l.b16 %v43
  %v128 = vunpack.c.l.b16 %v44
  %v129 = vunpack.c.l.b16 %v45
  %v130 = vunpack.c.l.b16 %v46
  %v131 = vunpack.c.l.b16 %v47
  %v132 = vpack.c.b16 %v101, %v100
  %v133 = vpack.c.b16 %v103, %v102
  %v134 = vpack.c.b16 %v105, %v104
  %v135 = vpack.c.b16 %v107, %v106
  %v136 = vpack.c.b16 %v109, %v108
  %v137 = vpack.c.b16 %v111, %v110
  %v138 = vpack.c.b16 %v113, %v112
  %v139 = vpack.c.b16 %v115, %v114
  %v140 = vpack.c.b16 %v117, %v116
  %v141 = vpack.c.b16 %v119, %v118
  %v142 = vpack.c.b16 %v121, %v120
  %v143 = vpack.c.b16 %v123, %v122
  %v144 = vpack.c.b16 %v125, %v124
  %v145 = vpack.c.b16 %v127, %v126
  %v146 = vpack.c.b16 %v129, %v128
  %v147 = vpack.c.b16 %v131, %v130
  %164 = vmatprep.subr.bf16.mxu0 0
  %165 = vmatpush1.bf16.msra.mxu0 %v139
  %166 = vmatprep.subr.bf16.mxu0 0
  %167 = vmatpush1.bf16.msra.mxu0 %v138
  %168 = vmatprep.subr.bf16.mxu0 0
  %169 = vmatpush1.bf16.msra.mxu0 %v137
  %170 = vmatprep.subr.bf16.mxu0 0
  %171 = vmatpush1.bf16.msra.mxu0 %v136
  %172 = vmatprep.subr.bf16.mxu0 0
  %173 = vmatpush1.bf16.msra.mxu0 %v135
  %174 = vmatprep.subr.bf16.mxu0 0
  %175 = vmatpush1.bf16.msra.mxu0 %v134
  %176 = vmatprep.subr.bf16.mxu0 0
  %177 = vmatpush1.bf16.msra.mxu0 %v133
  %178 = vmatprep.subr.bf16.mxu0 0
  %179 = vmatpush1.bf16.msra.mxu0 %v132
  %180 = vmatprep.subr.bf16.mxu0 0
  %181 = vmatpush2.bf16.msra.mxu0 %v147
  %182 = vmatprep.subr.bf16.mxu0 0
  %183 = vmatpush2.bf16.msra.mxu0 %v146
  %184 = vmatprep.subr.bf16.mxu0 0
  %185 = vmatpush2.bf16.msra.mxu0 %v145
  %186 = vmatprep.subr.bf16.mxu0 0
  %187 = vmatpush2.bf16.msra.mxu0 %v144
  %188 = vmatprep.subr.bf16.mxu0 0
  %189 = vmatpush2.bf16.msra.mxu0 %v143
  %190 = vmatprep.subr.bf16.mxu0 0
  %191 = vmatpush2.bf16.msra.mxu0 %v142
  %192 = vmatprep.subr.bf16.mxu0 0
  %193 = vmatpush2.bf16.msra.mxu0 %v141
  %194 = vmatprep.subr.bf16.mxu0 0
  %195 = vmatpush2.bf16.msra.mxu0 %v140
  %196 = vmatprep.mubr.bf16.mxu0 %v61
  %197 = vmatmul.mubr.bf16.gmra.mxu0 %v60
  %v198 = vpop.f32.mrf.mxu0
  %v199 = vadd.f32 0.0, %v198
  %v200 = vpop.f32.mrf.mxu0
  %v201 = vpop.f32.mrf.mxu0
  %v202 = vadd.f32 0.0, %v201
  %v203 = vpop.f32.mrf.mxu0
  %204 = vmatprep.mubr.bf16.mxu0 %v63
  %205 = vmatmul.mubr.bf16.gmra.mxu0 %v62
  %v206 = vpop.f32.mrf.mxu0
  %v207 = vadd.f32 0.0, %v206
  %v208 = vpop.f32.mrf.mxu0
  %v209 = vpop.f32.mrf.mxu0
  %v210 = vadd.f32 0.0, %v209
  %v211 = vpop.f32.mrf.mxu0
  %212 = vdwg.mxu0
  %s213 = smul.u32 0, 32
  %s214 = scalar_lea.vmem [#allocation2], %s213
  %215 = vst [vmem:[%s214] sm:$0xff] %v199
  %216 = vst [vmem:[%s214 + $0x8] sm:$0xff] %v202
  %217 = vst [vmem:[%s214 + $0x10] sm:$0xff] %v207
  %218 = vst [vmem:[%s214 + $0x18] sm:$0xff] %v210
  %p219 = scmp.eq.s32.totalorder 0, 0
  // Predicated region
  $region10: #{pix2pix_discriminator.7} parent=0 // pred_check
    %p220 = pneg %p219
  $region11: #{pix2pix_discriminator.7} parent=0 // pred_check_branch
    %222 = sbr.rel (%p220) target = $region13
  $region12: #{pix2pix_discriminator.7} parent=0 // pred_region
    %v223 = vld [vmem:[#allocation2] sm:$0xff]
    %v224 = vld [vmem:[#allocation2 + $0x8] sm:$0xff]
    %v225 = vld [vmem:[#allocation2 + $0x10] sm:$0xff]
    %v226 = vld [vmem:[#allocation2 + $0x18] sm:$0xff]
    %v227 = vadd.f32 %v223, %v224
    %v228 = vadd.f32 %v227, %v225
    %v229 = vadd.f32 %v228, %v226
    %v230 = vrot.slane %v229, 4
    %v231 = vadd.f32 %v229, %v230
    %v232 = vrot.slane %v231, 2
    %v233 = vadd.f32 %v231, %v232
    %v234 = vrot.slane %v233, 1
    %v235 = vadd.f32 %v233, %v234
    %v236 = vmul.f32 %v235, 0.03125
    %v237 = vsub.f32 %v223, %v236
    %v238 = vsub.f32 %v224, %v236
    %v239 = vsub.f32 %v225, %v236
    %v240 = vsub.f32 %v226, %v236
    %v241 = vmul.f32 %v237, %v237
    %v242 = vmul.f32 %v238, %v238
    %v243 = vmul.f32 %v239, %v239
    %v244 = vmul.f32 %v240, %v240
    %v245 = vadd.f32 %v241, %v242
    %v246 = vadd.f32 %v245, %v243
    %v247 = vadd.f32 %v246, %v244
    %v248 = vrot.slane %v247, 4
    %v249 = vadd.f32 %v247, %v248
    %v250 = vrot.slane %v249, 2
    %v251 = vadd.f32 %v249, %v250
    %v252 = vrot.slane %v251, 1
    %v253 = vadd.f32 %v251, %v252
    %v254 = vmul.f32 %v253, 0.03125
    %v255 = vmax.f32 %v254, 0.0
    %v256 = vadd.f32 %v255, 1e-05
    %v257 = vrsqrt.pop %v256
    %v258 = vmul.f32 %v237, %v257
    %v259 = vmul.f32 %v238, %v257
    %v260 = vmul.f32 %v239, %v257
    %v261 = vmul.f32 %v240, %v257
    %vm262 = vcmp.ge.f32.partialorder %v258, 0.0
    %vm263 = vcmp.ge.f32.partialorder %v259, 0.0
    %vm264 = vcmp.ge.f32.partialorder %v260, 0.0
    %vm265 = vcmp.ge.f32.partialorder %v261, 0.0
    %v266 = vmul.f32 %v258, 0.2
    %v267 = vmul.f32 %v259, 0.2
    %v268 = vmul.f32 %v260, 0.2
    %v269 = vmul.f32 %v261, 0.2
    %v270 = vsel %vm262, %v258, %v266
    %v271 = vsel %vm263, %v259, %v267
    %v272 = vsel %vm264, %v260, %v268
    %v273 = vsel %vm265, %v261, %v269
    %v274 = vpack.c.bf16 %v271, %v270
    %v275 = vpack.c.bf16 %v273, %v272
    %v278 = vunpack.c.l.b16 %v274
    %v279 = vunpack.c.h.b16 %v274
    %v280 = vunpack.c.l.b16 %v275
    %v281 = vunpack.c.h.b16 %v275
    %v282 = vpack.c.b16 %v278, %v278
    %v283 = vpack.c.b16 %v279, %v279
    %v284 = vpack.c.b16 %v280, %v280
    %v285 = vpack.c.b16 %v281, %v281
    %290 = vst [vmem:[%s2] sm:$0xf] %v282
    %291 = vst [vmem:[%s2 + $0x4] sm:$0xf] %v283
    %292 = vst [vmem:[%s2 + $0x8] sm:$0xf] %v284
    %293 = vst [vmem:[%s2 + $0xc] sm:$0xf] %v285
  $region13: #{pix2pix_discriminator.7} parent=0 // pred_fallthru
    _
  // Predicated region
  $region14: #{pix2pix_discriminator.7} parent=0 // pred_check
    _
  $region15: #{pix2pix_discriminator.7} parent=0 // pred_check_branch
    %295 = sbr.rel (0) target = $region17
  $region16: #{pix2pix_discriminator.7} parent=0 // pred_region
    _
  $region17: #{pix2pix_discriminator.7} parent=0 // pred_fallthru
    _
  // Predicated region
  $region18: #{pix2pix_discriminator.7} parent=0 // pred_check
    _
  $region19: #{pix2pix_discriminator.7} parent=0 // pred_check_branch
    %297 = sbr.rel (0) target = $region21
  $region20: #{pix2pix_discriminator.7} parent=0 // pred_region
    _
  $region21: #{pix2pix_discriminator.7} parent=0 // pred_fallthru
    _

// kernel: pix2pix_discriminator.8
$region0: #{pix2pix_discriminator.8}
  #allocation0 [shape = 'u32[]', space=smem, size = 0x4, offset = 0x4, fixed_abs, tag = 'smem constant byte address 0x4 - core index']
  #allocation1 [shape = 'u32[144,128]{1,0:T(1,128)}', space=vmem, size = 0x12000, scoped, tag = 'internal scratch']
  #allocation2 [shape = 'f32[8,128]{1,0:T(8,128)}', space=vmem, size = 0x1000, scoped, tag = 'scratch operand']
  %s0 = inlined_call_operand.vmem [shape: bf16[8,512], index: 0, kind: input, shape index: {}]
  %s1 = inlined_call_operand.vmem [shape: bf16[512,128], index: 1, kind: input, shape index: {}]
  %s2 = inlined_call_operand.vmem [shape: bf16[8,128], index: 2, kind: output, shape index: {}]
  %s3 = sld [smem:[#allocation0]]
  $region22: #{pix2pix_discriminator.8} parent=0
    _
  %s5 = ssub.s32 1, %s3
  %s6 = scalar_select 0, %s5, %s3
  // Predicated region
  $region2: #{pix2pix_discriminator.8} parent=0 // pred_check
    _
  $region3: #{pix2pix_discriminator.8} parent=0 // pred_check_branch
    %8 = sbr.rel (0) target = $region5
  $region4: #{pix2pix_discriminator.8} parent=0 // pred_region
    _
  $region5: #{pix2pix_discriminator.8} parent=0 // pred_fallthru
    _
  // Predicated region
  $region6: #{pix2pix_discriminator.8} parent=0 // pred_check
    _
  $region7: #{pix2pix_discriminator.8} parent=0 // pred_check_branch
    %10 = sbr.rel (0) target = $region9
  $region8: #{pix2pix_discriminator.8} parent=0 // pred_region
    _
  $region9: #{pix2pix_discriminator.8} parent=0 // pred_fallthru
    _
  %v12 = vld [vmem:[%s0] sm:$0xff]
  %v13 = vld [vmem:[%s0 + $0x8] sm:$0xff]
  %v14 = vld [vmem:[%s1] sm:$0xf]
  %v15 = vld [vmem:[%s1 + $0x4] sm:$0xf]
  %v16 = vld [vmem:[%s1 + $0x8] sm:$0xf]
  %v17 = vld [vmem:[%s1 + $0xc] sm:$0xf]
  %v18 = vld [vmem:[%s1 + $0x10] sm:$0xf]
  %v19 = vld [vmem:[%s1 + $0x14] sm:$0xf]
  %v20 = vld [vmem:[%s1 + $0x18] sm:$0xf]
  %v21 = vld [vmem:[%s1 + $0x1c] sm:$0xf]
  %v22 = vld [vmem:[%s1 + $0x20] sm:$0xf]
  %v23 = vld [vmem:[%s1 + $0x24] sm:$0xf]
  %v24 = vld [vmem:[%s1 + $0x28] sm:$0xf]
  %v25 = vld [vmem:[%s1 + $0x2c] sm:$0xf]
  %v26 = vld [vmem:[%s1 + $0x30] sm:$0xf]
  %v27 = vld [vmem:[%s1 + $0x34] sm:$0xf]
  %v28 = vld [vmem:[%s1 + $0x38] sm:$0xf]
  %v29 = vld [vmem:[%s1 + $0x3c] sm:$0xf]
  %v30 = vld [vmem:[%s1 + $0x40] sm:$0xf]
  %v31 = vld [vmem:[%s1 + $0x44] sm:$0xf]
  %v32 = vld [vmem:[%s1 + $0x48] sm:$0xf]
  %v33 = vld [vmem:[%s1 + $0x4c] sm:$0xf]
  %v34 = vld [vmem:[%s1 + $0x50] sm:$0xf]
  %v35 = vld [vmem:[%s1 + $0x54] sm:$0xf]
  %v36 = vld [vmem:[%s1 + $0x58] sm:$0xf]
  %v37 = vld [vmem:[%s1 + $0x5c] sm:$0xf]
  %v38 = vld [vmem:[%s1 + $0x60] sm:$0xf]
  %v39 = vld [vmem:[%s1 + $0x64] sm:$0xf]
  %v40 = vld [vmem:[%s1 + $0x68] sm:$0xf]
  %v41 = vld [vmem:[%s1 + $0x6c] sm:$0xf]
  %v42 = vld [vmem:[%s1 + $0x70] sm:$0xf]
  %v43 = vld [vmem:[%s1 + $0x74] sm:$0xf]
  %v44 = vld [vmem:[%s1 + $0x78] sm:$0xf]
  %v45 = vld [vmem:[%s1 + $0x7c] sm:$0xf]
  %v46 = vld [vmem:[%s1 + $0x80] sm:$0xf]
  %v47 = vld [vmem:[%s1 + $0x84] sm:$0xf]
  %v48 = vld [vmem:[%s1 + $0x88] sm:$0xf]
  %v49 = vld [vmem:[%s1 + $0x8c] sm:$0xf]
  %v50 = vld [vmem:[%s1 + $0x90] sm:$0xf]
  %v51 = vld [vmem:[%s1 + $0x94] sm:$0xf]
  %v52 = vld [vmem:[%s1 + $0x98] sm:$0xf]
  %v53 = vld [vmem:[%s1 + $0x9c] sm:$0xf]
  %v54 = vld [vmem:[%s1 + $0xa0] sm:$0xf]
  %v55 = vld [vmem:[%s1 + $0xa4] sm:$0xf]
  %v56 = vld [vmem:[%s1 + $0xa8] sm:$0xf]
  %v57 = vld [vmem:[%s1 + $0xac] sm:$0xf]
  %v58 = vld [vmem:[%s1 + $0xb0] sm:$0xf]
  %v59 = vld [vmem:[%s1 + $0xb4] sm:$0xf]
  %v60 = vld [vmem:[%s1 + $0xb8] sm:$0xf]
  %v61 = vld [vmem:[%s1 + $0xbc] sm:$0xf]
  %v62 = vld [vmem:[%s1 + $0xc0] sm:$0xf]
  %v63 = vld [vmem:[%s1 + $0xc4] sm:$0xf]
  %v64 = vld [vmem:[%s1 + $0xc8] sm:$0xf]
  %v65 = vld [vmem:[%s1 + $0xcc] sm:$0xf]
  %v66 = vld [vmem:[%s1 + $0xd0] sm:$0xf]
  %v67 = vld [vmem:[%s1 + $0xd4] sm:$0xf]
  %v68 = vld [vmem:[%s1 + $0xd8] sm:$0xf]
  %v69 = vld [vmem:[%s1 + $0xdc] sm:$0xf]
  %v70 = vld [vmem:[%s1 + $0xe0] sm:$0xf]
  %v71 = vld [vmem:[%s1 + $0xe4] sm:$0xf]
  %v72 = vld [vmem:[%s1 + $0xe8] sm:$0xf]
  %v73 = vld [vmem:[%s1 + $0xec] sm:$0xf]
  %v74 = vld [vmem:[%s1 + $0xf0] sm:$0xf]
  %v75 = vld [vmem:[%s1 + $0xf4] sm:$0xf]
  %v76 = vld [vmem:[%s1 + $0xf8] sm:$0xf]
  %v77 = vld [vmem:[%s1 + $0xfc] sm:$0xf]
  %v80 = vunpack.c.l.b16 %v12
  %v81 = vunpack.c.h.b16 %v12
  %v82 = vunpack.c.l.b16 %v13
  %v83 = vunpack.c.h.b16 %v13
  %v84 = vpack.c.b16 %v80, %v80
  %v85 = vpack.c.b16 %v81, %v81
  %v86 = vpack.c.b16 %v82, %v82
  %v87 = vpack.c.b16 %v83, %v83
  %v156 = vunpack.c.l.b16 %v14
  %v157 = vunpack.c.l.b16 %v15
  %v158 = vunpack.c.l.b16 %v16
  %v159 = vunpack.c.l.b16 %v17
  %v160 = vunpack.c.l.b16 %v18
  %v161 = vunpack.c.l.b16 %v19
  %v162 = vunpack.c.l.b16 %v20
  %v163 = vunpack.c.l.b16 %v21
  %v164 = vunpack.c.l.b16 %v22
  %v165 = vunpack.c.l.b16 %v23
  %v166 = vunpack.c.l.b16 %v24
  %v167 = vunpack.c.l.b16 %v25
  %v168 = vunpack.c.l.b16 %v26
  %v169 = vunpack.c.l.b16 %v27
  %v170 = vunpack.c.l.b16 %v28
  %v171 = vunpack.c.l.b16 %v29
  %v172 = vunpack.c.l.b16 %v30
  %v173 = vunpack.c.l.b16 %v31
  %v174 = vunpack.c.l.b16 %v32
  %v175 = vunpack.c.l.b16 %v33
  %v176 = vunpack.c.l.b16 %v34
  %v177 = vunpack.c.l.b16 %v35
  %v178 = vunpack.c.l.b16 %v36
  %v179 = vunpack.c.l.b16 %v37
  %v180 = vunpack.c.l.b16 %v38
  %v181 = vunpack.c.l.b16 %v39
  %v182 = vunpack.c.l.b16 %v40
  %v183 = vunpack.c.l.b16 %v41
  %v184 = vunpack.c.l.b16 %v42
  %v185 = vunpack.c.l.b16 %v43
  %v186 = vunpack.c.l.b16 %v44
  %v187 = vunpack.c.l.b16 %v45
  %v188 = vunpack.c.l.b16 %v46
  %v189 = vunpack.c.l.b16 %v47
  %v190 = vunpack.c.l.b16 %v48
  %v191 = vunpack.c.l.b16 %v49
  %v192 = vunpack.c.l.b16 %v50
  %v193 = vunpack.c.l.b16 %v51
  %v194 = vunpack.c.l.b16 %v52
  %v195 = vunpack.c.l.b16 %v53
  %v196 = vunpack.c.l.b16 %v54
  %v197 = vunpack.c.l.b16 %v55
  %v198 = vunpack.c.l.b16 %v56
  %v199 = vunpack.c.l.b16 %v57
  %v200 = vunpack.c.l.b16 %v58
  %v201 = vunpack.c.l.b16 %v59
  %v202 = vunpack.c.l.b16 %v60
  %v203 = vunpack.c.l.b16 %v61
  %v204 = vunpack.c.l.b16 %v62
  %v205 = vunpack.c.l.b16 %v63
  %v206 = vunpack.c.l.b16 %v64
  %v207 = vunpack.c.l.b16 %v65
  %v208 = vunpack.c.l.b16 %v66
  %v209 = vunpack.c.l.b16 %v67
  %v210 = vunpack.c.l.b16 %v68
  %v211 = vunpack.c.l.b16 %v69
  %v212 = vunpack.c.l.b16 %v70
  %v213 = vunpack.c.l.b16 %v71
  %v214 = vunpack.c.l.b16 %v72
  %v215 = vunpack.c.l.b16 %v73
  %v216 = vunpack.c.l.b16 %v74
  %v217 = vunpack.c.l.b16 %v75
  %v218 = vunpack.c.l.b16 %v76
  %v219 = vunpack.c.l.b16 %v77
  %v220 = vpack.c.b16 %v157, %v156
  %v221 = vpack.c.b16 %v159, %v158
  %v222 = vpack.c.b16 %v161, %v160
  %v223 = vpack.c.b16 %v163, %v162
  %v224 = vpack.c.b16 %v165, %v164
  %v225 = vpack.c.b16 %v167, %v166
  %v226 = vpack.c.b16 %v169, %v168
  %v227 = vpack.c.b16 %v171, %v170
  %v228 = vpack.c.b16 %v173, %v172
  %v229 = vpack.c.b16 %v175, %v174
  %v230 = vpack.c.b16 %v177, %v176
  %v231 = vpack.c.b16 %v179, %v178
  %v232 = vpack.c.b16 %v181, %v180
  %v233 = vpack.c.b16 %v183, %v182
  %v234 = vpack.c.b16 %v185, %v184
  %v235 = vpack.c.b16 %v187, %v186
  %v236 = vpack.c.b16 %v189, %v188
  %v237 = vpack.c.b16 %v191, %v190
  %v238 = vpack.c.b16 %v193, %v192
  %v239 = vpack.c.b16 %v195, %v194
  %v240 = vpack.c.b16 %v197, %v196
  %v241 = vpack.c.b16 %v199, %v198
  %v242 = vpack.c.b16 %v201, %v200
  %v243 = vpack.c.b16 %v203, %v202
  %v244 = vpack.c.b16 %v205, %v204
  %v245 = vpack.c.b16 %v207, %v206
  %v246 = vpack.c.b16 %v209, %v208
  %v247 = vpack.c.b16 %v211, %v210
  %v248 = vpack.c.b16 %v213, %v212
  %v249 = vpack.c.b16 %v215, %v214
  %v250 = vpack.c.b16 %v217, %v216
  %v251 = vpack.c.b16 %v219, %v218
  %284 = vmatprep.subr.bf16.mxu0 0
  %285 = vmatpush1.bf16.msra.mxu0 %v227
  %286 = vmatprep.subr.bf16.mxu0 0
  %287 = vmatpush1.bf16.msra.mxu0 %v226
  %288 = vmatprep.subr.bf16.mxu0 0
  %289 = vmatpush1.bf16.msra.mxu0 %v225
  %290 = vmatprep.subr.bf16.mxu0 0
  %291 = vmatpush1.bf16.msra.mxu0 %v224
  %292 = vmatprep.subr.bf16.mxu0 0
  %293 = vmatpush1.bf16.msra.mxu0 %v223
  %294 = vmatprep.subr.bf16.mxu0 0
  %295 = vmatpush1.bf16.msra.mxu0 %v222
  %296 = vmatprep.subr.bf16.mxu0 0
  %297 = vmatpush1.bf16.msra.mxu0 %v221
  %298 = vmatprep.subr.bf16.mxu0 0
  %299 = vmatpush1.bf16.msra.mxu0 %v220
  %300 = vmatprep.subr.bf16.mxu0 0
  %301 = vmatpush2.bf16.msra.mxu0 %v235
  %302 = vmatprep.subr.bf16.mxu0 0
  %303 = vmatpush2.bf16.msra.mxu0 %v234
  %304 = vmatprep.subr.bf16.mxu0 0
  %305 = vmatpush2.bf16.msra.mxu0 %v233
  %306 = vmatprep.subr.bf16.mxu0 0
  %307 = vmatpush2.bf16.msra.mxu0 %v232
  %308 = vmatprep.subr.bf16.mxu0 0
  %309 = vmatpush2.bf16.msra.mxu0 %v231
  %310 = vmatprep.subr.bf16.mxu0 0
  %311 = vmatpush2.bf16.msra.mxu0 %v230
  %312 = vmatprep.subr.bf16.mxu0 0
  %313 = vmatpush2.bf16.msra.mxu0 %v229
  %314 = vmatprep.subr.bf16.mxu0 0
  %315 = vmatpush2.bf16.msra.mxu0 %v228
  %316 = vmatprep.mubr.bf16.mxu0 %v85
  %317 = vmatmul.mubr.bf16.gmra.mxu0 %v84
  %v318 = vpop.f32.mrf.mxu0
  %v319 = vadd.f32 0.0, %v318
  %v320 = vpop.f32.mrf.mxu0
  %v321 = vpop.f32.mrf.mxu0
  %v322 = vpop.f32.mrf.mxu0
  %323 = vdwg.mxu0
  %324 = vmatprep.subr.bf16.mxu0 0
  %325 = vmatpush1.bf16.msra.mxu0 %v243
  %326 = vmatprep.subr.bf16.mxu0 0
  %327 = vmatpush1.bf16.msra.mxu0 %v242
  %328 = vmatprep.subr.bf16.mxu0 0
  %329 = vmatpush1.bf16.msra.mxu0 %v241
  %330 = vmatprep.subr.bf16.mxu0 0
  %331 = vmatpush1.bf16.msra.mxu0 %v240
  %332 = vmatprep.subr.bf16.mxu0 0
  %333 = vmatpush1.bf16.msra.mxu0 %v239
  %334 = vmatprep.subr.bf16.mxu0 0
  %335 = vmatpush1.bf16.msra.mxu0 %v238
  %336 = vmatprep.subr.bf16.mxu0 0
  %337 = vmatpush1.bf16.msra.mxu0 %v237
  %338 = vmatprep.subr.bf16.mxu0 0
  %339 = vmatpush1.bf16.msra.mxu0 %v236
  %340 = vmatprep.subr.bf16.mxu0 0
  %341 = vmatpush2.bf16.msra.mxu0 %v251
  %342 = vmatprep.subr.bf16.mxu0 0
  %343 = vmatpush2.bf16.msra.mxu0 %v250
  %344 = vmatprep.subr.bf16.mxu0 0
  %345 = vmatpush2.bf16.msra.mxu0 %v249
  %346 = vmatprep.subr.bf16.mxu0 0
  %347 = vmatpush2.bf16.msra.mxu0 %v248
  %348 = vmatprep.subr.bf16.mxu0 0
  %349 = vmatpush2.bf16.msra.mxu0 %v247
  %350 = vmatprep.subr.bf16.mxu0 0
  %351 = vmatpush2.bf16.msra.mxu0 %v246
  %352 = vmatprep.subr.bf16.mxu0 0
  %353 = vmatpush2.bf16.msra.mxu0 %v245
  %354 = vmatprep.subr.bf16.mxu0 0
  %355 = vmatpush2.bf16.msra.mxu0 %v244
  %356 = vmatprep.mubr.bf16.mxu0 %v87
  %357 = vmatmul.mubr.bf16.gmra.mxu0 %v86
  %v358 = vpop.f32.mrf.mxu0
  %v359 = vadd.f32 %v319, %v358
  %v360 = vpop.f32.mrf.mxu0
  %v361 = vpop.f32.mrf.mxu0
  %v362 = vpop.f32.mrf.mxu0
  %363 = vdwg.mxu0
  %s364 = smul.u32 0, 8
  %s365 = scalar_lea.vmem [#allocation2], %s364
  %366 = vst [vmem:[%s365] sm:$0xff] %v359
  %p367 = scmp.eq.s32.totalorder 0, 0
  // Predicated region
  $region10: #{pix2pix_discriminator.8} parent=0 // pred_check
    %p368 = pneg %p367
  $region11: #{pix2pix_discriminator.8} parent=0 // pred_check_branch
    %370 = sbr.rel (%p368) target = $region13
  $region12: #{pix2pix_discriminator.8} parent=0 // pred_region
    %v371 = vld [vmem:[#allocation2] sm:$0xff]
    %v372 = vrot.slane %v371, 4
    %v373 = vadd.f32 %v371, %v372
    %v374 = vrot.slane %v373, 2
    %v375 = vadd.f32 %v373, %v374
    %v376 = vrot.slane %v375, 1
    %v377 = vadd.f32 %v375, %v376
    %v378 = vmul.f32 %v377, 0.125
    %v379 = vsub.f32 %v371, %v378
    %v380 = vmul.f32 %v379, %v379
    %v381 = vrot.slane %v380, 4
    %v382 = vadd.f32 %v380, %v381
    %v383 = vrot.slane %v382, 2
    %v384 = vadd.f32 %v382, %v383
    %v385 = vrot.slane %v384, 1
    %v386 = vadd.f32 %v384, %v385
    %v387 = vmul.f32 %v386, 0.125
    %v388 = vmax.f32 %v387, 0.0
    %v389 = vadd.f32 %v388, 1e-05
    %v390 = vrsqrt.pop %v389
    %v391 = vmul.f32 %v379, %v390
    %vm392 = vcmp.ge.f32.partialorder %v391, 0.0
    %v393 = vmul.f32 %v391, 0.2
    %v394 = vsel %vm392, %v391, %v393
    %v395 = vpack.c.bf16 %v394, %v394
    %396 = vst [vmem:[%s2] sm:$0xf] %v395
  $region13: #{pix2pix_discriminator.8} parent=0 // pred_fallthru
    _
  // Predicated region
  $region14: #{pix2pix_discriminator.8} parent=0 // pred_check
    _
  $region15: #{pix2pix_discriminator.8} parent=0 // pred_check_branch
    %398 = sbr.rel (0) target = $region17
  $region16: #{pix2pix_discriminator.8} parent=0 // pred_region
    _
  $region17: #{pix2pix_discriminator.8} parent=0 // pred_fallthru
    _
  // Predicated region
  $region18: #{pix2pix_discriminator.8} parent=0 // pred_check
    _
  $region19: #{pix2pix_discriminator.8} parent=0 // pred_check_branch
    %400 = sbr.rel (0) target = $region21
  $region20: #{pix2pix_discriminator.8} parent=0 // pred_region
    _
  $region21: #{pix2pix_discriminator.8} parent=0 // pred_fallthru
    _

// kernel: pix2pix_discriminator.9
$region0: #{pix2pix_discriminator.9}
  #allocation0 [shape = 'u32[]', space=smem, size = 0x4, offset = 0x4, fixed_abs, tag = 'smem constant byte address 0x4 - core index']
  #allocation1 [shape = 'u32[144,128]{1,0:T(1,128)}', space=vmem, size = 0x12000, scoped, tag = 'internal scratch']
  %s0 = inlined_call_operand.vmem [shape: bf16[8,1024], index: 0, kind: input, shape index: {}]
  %s1 = inlined_call_operand.vmem [shape: bf16[1024,128], index: 1, kind: input, shape index: {}]
  %s2 = inlined_call_operand.vmem [shape: f32[8,128], index: 2, kind: output, shape index: {}]
  %s3 = sld [smem:[#allocation0]]
  $region18: #{pix2pix_discriminator.9} parent=0
    _
  %s5 = ssub.s32 1, %s3
  %s6 = scalar_select 0, %s5, %s3
  // Predicated region
  $region2: #{pix2pix_discriminator.9} parent=0 // pred_check
    _
  $region3: #{pix2pix_discriminator.9} parent=0 // pred_check_branch
    %8 = sbr.rel (0) target = $region5
  $region4: #{pix2pix_discriminator.9} parent=0 // pred_region
    _
  $region5: #{pix2pix_discriminator.9} parent=0 // pred_fallthru
    _
  // Predicated region
  $region6: #{pix2pix_discriminator.9} parent=0 // pred_check
    _
  $region7: #{pix2pix_discriminator.9} parent=0 // pred_check_branch
    %10 = sbr.rel (0) target = $region9
  $region8: #{pix2pix_discriminator.9} parent=0 // pred_region
    _
  $region9: #{pix2pix_discriminator.9} parent=0 // pred_fallthru
    _
  %v12 = vld [vmem:[%s0] sm:$0xff]
  %v13 = vld [vmem:[%s0 + $0x8] sm:$0xff]
  %v14 = vld [vmem:[%s0 + $0x10] sm:$0xff]
  %v15 = vld [vmem:[%s0 + $0x18] sm:$0xff]
  %v16 = vld [vmem:[%s1] sm:$0xf]
  %v17 = vld [vmem:[%s1 + $0x4] sm:$0xf]
  %v18 = vld [vmem:[%s1 + $0x8] sm:$0xf]
  %v19 = vld [vmem:[%s1 + $0xc] sm:$0xf]
  %v20 = vld [vmem:[%s1 + $0x10] sm:$0xf]
  %v21 = vld [vmem:[%s1 + $0x14] sm:$0xf]
  %v22 = vld [vmem:[%s1 + $0x18] sm:$0xf]
  %v23 = vld [vmem:[%s1 + $0x1c] sm:$0xf]
  %v24 = vld [vmem:[%s1 + $0x20] sm:$0xf]
  %v25 = vld [vmem:[%s1 + $0x24] sm:$0xf]
  %v26 = vld [vmem:[%s1 + $0x28] sm:$0xf]
  %v27 = vld [vmem:[%s1 + $0x2c] sm:$0xf]
  %v28 = vld [vmem:[%s1 + $0x30] sm:$0xf]
  %v29 = vld [vmem:[%s1 + $0x34] sm:$0xf]
  %v30 = vld [vmem:[%s1 + $0x38] sm:$0xf]
  %v31 = vld [vmem:[%s1 + $0x3c] sm:$0xf]
  %v32 = vld [vmem:[%s1 + $0x40] sm:$0xf]
  %v33 = vld [vmem:[%s1 + $0x44] sm:$0xf]
  %v34 = vld [vmem:[%s1 + $0x48] sm:$0xf]
  %v35 = vld [vmem:[%s1 + $0x4c] sm:$0xf]
  %v36 = vld [vmem:[%s1 + $0x50] sm:$0xf]
  %v37 = vld [vmem:[%s1 + $0x54] sm:$0xf]
  %v38 = vld [vmem:[%s1 + $0x58] sm:$0xf]
  %v39 = vld [vmem:[%s1 + $0x5c] sm:$0xf]
  %v40 = vld [vmem:[%s1 + $0x60] sm:$0xf]
  %v41 = vld [vmem:[%s1 + $0x64] sm:$0xf]
  %v42 = vld [vmem:[%s1 + $0x68] sm:$0xf]
  %v43 = vld [vmem:[%s1 + $0x6c] sm:$0xf]
  %v44 = vld [vmem:[%s1 + $0x70] sm:$0xf]
  %v45 = vld [vmem:[%s1 + $0x74] sm:$0xf]
  %v46 = vld [vmem:[%s1 + $0x78] sm:$0xf]
  %v47 = vld [vmem:[%s1 + $0x7c] sm:$0xf]
  %v48 = vld [vmem:[%s1 + $0x80] sm:$0xf]
  %v49 = vld [vmem:[%s1 + $0x84] sm:$0xf]
  %v50 = vld [vmem:[%s1 + $0x88] sm:$0xf]
  %v51 = vld [vmem:[%s1 + $0x8c] sm:$0xf]
  %v52 = vld [vmem:[%s1 + $0x90] sm:$0xf]
  %v53 = vld [vmem:[%s1 + $0x94] sm:$0xf]
  %v54 = vld [vmem:[%s1 + $0x98] sm:$0xf]
  %v55 = vld [vmem:[%s1 + $0x9c] sm:$0xf]
  %v56 = vld [vmem:[%s1 + $0xa0] sm:$0xf]
  %v57 = vld [vmem:[%s1 + $0xa4] sm:$0xf]
  %v58 = vld [vmem:[%s1 + $0xa8] sm:$0xf]
  %v59 = vld [vmem:[%s1 + $0xac] sm:$0xf]
  %v60 = vld [vmem:[%s1 + $0xb0] sm:$0xf]
  %v61 = vld [vmem:[%s1 + $0xb4] sm:$0xf]
  %v62 = vld [vmem:[%s1 + $0xb8] sm:$0xf]
  %v63 = vld [vmem:[%s1 + $0xbc] sm:$0xf]
  %v64 = vld [vmem:[%s1 + $0xc0] sm:$0xf]
  %v65 = vld [vmem:[%s1 + $0xc4] sm:$0xf]
  %v66 = vld [vmem:[%s1 + $0xc8] sm:$0xf]
  %v67 = vld [vmem:[%s1 + $0xcc] sm:$0xf]
  %v68 = vld [vmem:[%s1 + $0xd0] sm:$0xf]
  %v69 = vld [vmem:[%s1 + $0xd4] sm:$0xf]
  %v70 = vld [vmem:[%s1 + $0xd8] sm:$0xf]
  %v71 = vld [vmem:[%s1 + $0xdc] sm:$0xf]
  %v72 = vld [vmem:[%s1 + $0xe0] sm:$0xf]
  %v73 = vld [vmem:[%s1 + $0xe4] sm:$0xf]
  %v74 = vld [vmem:[%s1 + $0xe8] sm:$0xf]
  %v75 = vld [vmem:[%s1 + $0xec] sm:$0xf]
  %v76 = vld [vmem:[%s1 + $0xf0] sm:$0xf]
  %v77 = vld [vmem:[%s1 + $0xf4] sm:$0xf]
  %v78 = vld [vmem:[%s1 + $0xf8] sm:$0xf]
  %v79 = vld [vmem:[%s1 + $0xfc] sm:$0xf]
  %v80 = vld [vmem:[%s1 + $0x100] sm:$0xf]
  %v81 = vld [vmem:[%s1 + $0x104] sm:$0xf]
  %v82 = vld [vmem:[%s1 + $0x108] sm:$0xf]
  %v83 = vld [vmem:[%s1 + $0x10c] sm:$0xf]
  %v84 = vld [vmem:[%s1 + $0x110] sm:$0xf]
  %v85 = vld [vmem:[%s1 + $0x114] sm:$0xf]
  %v86 = vld [vmem:[%s1 + $0x118] sm:$0xf]
  %v87 = vld [vmem:[%s1 + $0x11c] sm:$0xf]
  %v88 = vld [vmem:[%s1 + $0x120] sm:$0xf]
  %v89 = vld [vmem:[%s1 + $0x124] sm:$0xf]
  %v90 = vld [vmem:[%s1 + $0x128] sm:$0xf]
  %v91 = vld [vmem:[%s1 + $0x12c] sm:$0xf]
  %v92 = vld [vmem:[%s1 + $0x130] sm:$0xf]
  %v93 = vld [vmem:[%s1 + $0x134] sm:$0xf]
  %v94 = vld [vmem:[%s1 + $0x138] sm:$0xf]
  %v95 = vld [vmem:[%s1 + $0x13c] sm:$0xf]
  %v96 = vld [vmem:[%s1 + $0x140] sm:$0xf]
  %v97 = vld [vmem:[%s1 + $0x144] sm:$0xf]
  %v98 = vld [vmem:[%s1 + $0x148] sm:$0xf]
  %v99 = vld [vmem:[%s1 + $0x14c] sm:$0xf]
  %v100 = vld [vmem:[%s1 + $0x150] sm:$0xf]
  %v101 = vld [vmem:[%s1 + $0x154] sm:$0xf]
  %v102 = vld [vmem:[%s1 + $0x158] sm:$0xf]
  %v103 = vld [vmem:[%s1 + $0x15c] sm:$0xf]
  %v104 = vld [vmem:[%s1 + $0x160] sm:$0xf]
  %v105 = vld [vmem:[%s1 + $0x164] sm:$0xf]
  %v106 = vld [vmem:[%s1 + $0x168] sm:$0xf]
  %v107 = vld [vmem:[%s1 + $0x16c] sm:$0xf]
  %v108 = vld [vmem:[%s1 + $0x170] sm:$0xf]
  %v109 = vld [vmem:[%s1 + $0x174] sm:$0xf]
  %v110 = vld [vmem:[%s1 + $0x178] sm:$0xf]
  %v111 = vld [vmem:[%s1 + $0x17c] sm:$0xf]
  %v112 = vld [vmem:[%s1 + $0x180] sm:$0xf]
  %v113 = vld [vmem:[%s1 + $0x184] sm:$0xf]
  %v114 = vld [vmem:[%s1 + $0x188] sm:$0xf]
  %v115 = vld [vmem:[%s1 + $0x18c] sm:$0xf]
  %v116 = vld [vmem:[%s1 + $0x190] sm:$0xf]
  %v117 = vld [vmem:[%s1 + $0x194] sm:$0xf]
  %v118 = vld [vmem:[%s1 + $0x198] sm:$0xf]
  %v119 = vld [vmem:[%s1 + $0x19c] sm:$0xf]
  %v120 = vld [vmem:[%s1 + $0x1a0] sm:$0xf]
  %v121 = vld [vmem:[%s1 + $0x1a4] sm:$0xf]
  %v122 = vld [vmem:[%s1 + $0x1a8] sm:$0xf]
  %v123 = vld [vmem:[%s1 + $0x1ac] sm:$0xf]
  %v124 = vld [vmem:[%s1 + $0x1b0] sm:$0xf]
  %v125 = vld [vmem:[%s1 + $0x1b4] sm:$0xf]
  %v126 = vld [vmem:[%s1 + $0x1b8] sm:$0xf]
  %v127 = vld [vmem:[%s1 + $0x1bc] sm:$0xf]
  %v128 = vld [vmem:[%s1 + $0x1c0] sm:$0xf]
  %v129 = vld [vmem:[%s1 + $0x1c4] sm:$0xf]
  %v130 = vld [vmem:[%s1 + $0x1c8] sm:$0xf]
  %v131 = vld [vmem:[%s1 + $0x1cc] sm:$0xf]
  %v132 = vld [vmem:[%s1 + $0x1d0] sm:$0xf]
  %v133 = vld [vmem:[%s1 + $0x1d4] sm:$0xf]
  %v134 = vld [vmem:[%s1 + $0x1d8] sm:$0xf]
  %v135 = vld [vmem:[%s1 + $0x1dc] sm:$0xf]
  %v136 = vld [vmem:[%s1 + $0x1e0] sm:$0xf]
  %v137 = vld [vmem:[%s1 + $0x1e4] sm:$0xf]
  %v138 = vld [vmem:[%s1 + $0x1e8] sm:$0xf]
  %v139 = vld [vmem:[%s1 + $0x1ec] sm:$0xf]
  %v140 = vld [vmem:[%s1 + $0x1f0] sm:$0xf]
  %v141 = vld [vmem:[%s1 + $0x1f4] sm:$0xf]
  %v142 = vld [vmem:[%s1 + $0x1f8] sm:$0xf]
  %v143 = vld [vmem:[%s1 + $0x1fc] sm:$0xf]
  %v148 = vunpack.c.l.b16 %v12
  %v149 = vunpack.c.h.b16 %v12
  %v150 = vunpack.c.l.b16 %v13
  %v151 = vunpack.c.h.b16 %v13
  %v152 = vunpack.c.l.b16 %v14
  %v153 = vunpack.c.h.b16 %v14
  %v154 = vunpack.c.l.b16 %v15
  %v155 = vunpack.c.h.b16 %v15
  %v156 = vpack.c.b16 %v148, %v148
  %v157 = vpack.c.b16 %v149, %v149
  %v158 = vpack.c.b16 %v150, %v150
  %v159 = vpack.c.b16 %v151, %v151
  %v160 = vpack.c.b16 %v152, %v152
  %v161 = vpack.c.b16 %v153, %v153
  %v162 = vpack.c.b16 %v154, %v154
  %v163 = vpack.c.b16 %v155, %v155
  %v300 = vunpack.c.l.b16 %v16
  %v301 = vunpack.c.l.b16 %v17
  %v302 = vunpack.c.l.b16 %v18
  %v303 = vunpack.c.l.b16 %v19
  %v304 = vunpack.c.l.b16 %v20
  %v305 = vunpack.c.l.b16 %v21
  %v306 = vunpack.c.l.b16 %v22
  %v307 = vunpack.c.l.b16 %v23
  %v308 = vunpack.c.l.b16 %v24
  %v309 = vunpack.c.l.b16 %v25
  %v310 = vunpack.c.l.b16 %v26
  %v311 = vunpack.c.l.b16 %v27
  %v312 = vunpack.c.l.b16 %v28
  %v313 = vunpack.c.l.b16 %v29
  %v314 = vunpack.c.l.b16 %v30
  %v315 = vunpack.c.l.b16 %v31
  %v316 = vunpack.c.l.b16 %v32
  %v317 = vunpack.c.l.b16 %v33
  %v318 = vunpack.c.l.b16 %v34
  %v319 = vunpack.c.l.b16 %v35
  %v320 = vunpack.c.l.b16 %v36
  %v321 = vunpack.c.l.b16 %v37
  %v322 = vunpack.c.l.b16 %v38
  %v323 = vunpack.c.l.b16 %v39
  %v324 = vunpack.c.l.b16 %v40
  %v325 = vunpack.c.l.b16 %v41
  %v326 = vunpack.c.l.b16 %v42
  %v327 = vunpack.c.l.b16 %v43
  %v328 = vunpack.c.l.b16 %v44
  %v329 = vunpack.c.l.b16 %v45
  %v330 = vunpack.c.l.b16 %v46
  %v331 = vunpack.c.l.b16 %v47
  %v332 = vunpack.c.l.b16 %v48
  %v333 = vunpack.c.l.b16 %v49
  %v334 = vunpack.c.l.b16 %v50
  %v335 = vunpack.c.l.b16 %v51
  %v336 = vunpack.c.l.b16 %v52
  %v337 = vunpack.c.l.b16 %v53
  %v338 = vunpack.c.l.b16 %v54
  %v339 = vunpack.c.l.b16 %v55
  %v340 = vunpack.c.l.b16 %v56
  %v341 = vunpack.c.l.b16 %v57
  %v342 = vunpack.c.l.b16 %v58
  %v343 = vunpack.c.l.b16 %v59
  %v344 = vunpack.c.l.b16 %v60
  %v345 = vunpack.c.l.b16 %v61
  %v346 = vunpack.c.l.b16 %v62
  %v347 = vunpack.c.l.b16 %v63
  %v348 = vunpack.c.l.b16 %v64
  %v349 = vunpack.c.l.b16 %v65
  %v350 = vunpack.c.l.b16 %v66
  %v351 = vunpack.c.l.b16 %v67
  %v352 = vunpack.c.l.b16 %v68
  %v353 = vunpack.c.l.b16 %v69
  %v354 = vunpack.c.l.b16 %v70
  %v355 = vunpack.c.l.b16 %v71
  %v356 = vunpack.c.l.b16 %v72
  %v357 = vunpack.c.l.b16 %v73
  %v358 = vunpack.c.l.b16 %v74
  %v359 = vunpack.c.l.b16 %v75
  %v360 = vunpack.c.l.b16 %v76
  %v361 = vunpack.c.l.b16 %v77
  %v362 = vunpack.c.l.b16 %v78
  %v363 = vunpack.c.l.b16 %v79
  %v364 = vunpack.c.l.b16 %v80
  %v365 = vunpack.c.l.b16 %v81
  %v366 = vunpack.c.l.b16 %v82
  %v367 = vunpack.c.l.b16 %v83
  %v368 = vunpack.c.l.b16 %v84
  %v369 = vunpack.c.l.b16 %v85
  %v370 = vunpack.c.l.b16 %v86
  %v371 = vunpack.c.l.b16 %v87
  %v372 = vunpack.c.l.b16 %v88
  %v373 = vunpack.c.l.b16 %v89
  %v374 = vunpack.c.l.b16 %v90
  %v375 = vunpack.c.l.b16 %v91
  %v376 = vunpack.c.l.b16 %v92
  %v377 = vunpack.c.l.b16 %v93
  %v378 = vunpack.c.l.b16 %v94
  %v379 = vunpack.c.l.b16 %v95
  %v380 = vunpack.c.l.b16 %v96
  %v381 = vunpack.c.l.b16 %v97
  %v382 = vunpack.c.l.b16 %v98
  %v383 = vunpack.c.l.b16 %v99
  %v384 = vunpack.c.l.b16 %v100
  %v385 = vunpack.c.l.b16 %v101
  %v386 = vunpack.c.l.b16 %v102
  %v387 = vunpack.c.l.b16 %v103
  %v388 = vunpack.c.l.b16 %v104
  %v389 = vunpack.c.l.b16 %v105
  %v390 = vunpack.c.l.b16 %v106
  %v391 = vunpack.c.l.b16 %v107
  %v392 = vunpack.c.l.b16 %v108
  %v393 = vunpack.c.l.b16 %v109
  %v394 = vunpack.c.l.b16 %v110
  %v395 = vunpack.c.l.b16 %v111
  %v396 = vunpack.c.l.b16 %v112
  %v397 = vunpack.c.l.b16 %v113
  %v398 = vunpack.c.l.b16 %v114
  %v399 = vunpack.c.l.b16 %v115
  %v400 = vunpack.c.l.b16 %v116
  %v401 = vunpack.c.l.b16 %v117
  %v402 = vunpack.c.l.b16 %v118
  %v403 = vunpack.c.l.b16 %v119
  %v404 = vunpack.c.l.b16 %v120
  %v405 = vunpack.c.l.b16 %v121
  %v406 = vunpack.c.l.b16 %v122
  %v407 = vunpack.c.l.b16 %v123
  %v408 = vunpack.c.l.b16 %v124
  %v409 = vunpack.c.l.b16 %v125
  %v410 = vunpack.c.l.b16 %v126
  %v411 = vunpack.c.l.b16 %v127
  %v412 = vunpack.c.l.b16 %v128
  %v413 = vunpack.c.l.b16 %v129
  %v414 = vunpack.c.l.b16 %v130
  %v415 = vunpack.c.l.b16 %v131
  %v416 = vunpack.c.l.b16 %v132
  %v417 = vunpack.c.l.b16 %v133
  %v418 = vunpack.c.l.b16 %v134
  %v419 = vunpack.c.l.b16 %v135
  %v420 = vunpack.c.l.b16 %v136
  %v421 = vunpack.c.l.b16 %v137
  %v422 = vunpack.c.l.b16 %v138
  %v423 = vunpack.c.l.b16 %v139
  %v424 = vunpack.c.l.b16 %v140
  %v425 = vunpack.c.l.b16 %v141
  %v426 = vunpack.c.l.b16 %v142
  %v427 = vunpack.c.l.b16 %v143
  %v428 = vpack.c.b16 %v301, %v300
  %v429 = vpack.c.b16 %v303, %v302
  %v430 = vpack.c.b16 %v305, %v304
  %v431 = vpack.c.b16 %v307, %v306
  %v432 = vpack.c.b16 %v309, %v308
  %v433 = vpack.c.b16 %v311, %v310
  %v434 = vpack.c.b16 %v313, %v312
  %v435 = vpack.c.b16 %v315, %v314
  %v436 = vpack.c.b16 %v317, %v316
  %v437 = vpack.c.b16 %v319, %v318
  %v438 = vpack.c.b16 %v321, %v320
  %v439 = vpack.c.b16 %v323, %v322
  %v440 = vpack.c.b16 %v325, %v324
  %v441 = vpack.c.b16 %v327, %v326
  %v442 = vpack.c.b16 %v329, %v328
  %v443 = vpack.c.b16 %v331, %v330
  %v444 = vpack.c.b16 %v333, %v332
  %v445 = vpack.c.b16 %v335, %v334
  %v446 = vpack.c.b16 %v337, %v336
  %v447 = vpack.c.b16 %v339, %v338
  %v448 = vpack.c.b16 %v341, %v340
  %v449 = vpack.c.b16 %v343, %v342
  %v450 = vpack.c.b16 %v345, %v344
  %v451 = vpack.c.b16 %v347, %v346
  %v452 = vpack.c.b16 %v349, %v348
  %v453 = vpack.c.b16 %v351, %v350
  %v454 = vpack.c.b16 %v353, %v352
  %v455 = vpack.c.b16 %v355, %v354
  %v456 = vpack.c.b16 %v357, %v356
  %v457 = vpack.c.b16 %v359, %v358
  %v458 = vpack.c.b16 %v361, %v360
  %v459 = vpack.c.b16 %v363, %v362
  %v460 = vpack.c.b16 %v365, %v364
  %v461 = vpack.c.b16 %v367, %v366
  %v462 = vpack.c.b16 %v369, %v368
  %v463 = vpack.c.b16 %v371, %v370
  %v464 = vpack.c.b16 %v373, %v372
  %v465 = vpack.c.b16 %v375, %v374
  %v466 = vpack.c.b16 %v377, %v376
  %v467 = vpack.c.b16 %v379, %v378
  %v468 = vpack.c.b16 %v381, %v380
  %v469 = vpack.c.b16 %v383, %v382
  %v470 = vpack.c.b16 %v385, %v384
  %v471 = vpack.c.b16 %v387, %v386
  %v472 = vpack.c.b16 %v389, %v388
  %v473 = vpack.c.b16 %v391, %v390
  %v474 = vpack.c.b16 %v393, %v392
  %v475 = vpack.c.b16 %v395, %v394
  %v476 = vpack.c.b16 %v397, %v396
  %v477 = vpack.c.b16 %v399, %v398
  %v478 = vpack.c.b16 %v401, %v400
  %v479 = vpack.c.b16 %v403, %v402
  %v480 = vpack.c.b16 %v405, %v404
  %v481 = vpack.c.b16 %v407, %v406
  %v482 = vpack.c.b16 %v409, %v408
  %v483 = vpack.c.b16 %v411, %v410
  %v484 = vpack.c.b16 %v413, %v412
  %v485 = vpack.c.b16 %v415, %v414
  %v486 = vpack.c.b16 %v417, %v416
  %v487 = vpack.c.b16 %v419, %v418
  %v488 = vpack.c.b16 %v421, %v420
  %v489 = vpack.c.b16 %v423, %v422
  %v490 = vpack.c.b16 %v425, %v424
  %v491 = vpack.c.b16 %v427, %v426
  %556 = vmatprep.subr.bf16.mxu0 0
  %557 = vmatpush1.bf16.msra.mxu0 %v435
  %558 = vmatprep.subr.bf16.mxu0 0
  %559 = vmatpush1.bf16.msra.mxu0 %v434
  %560 = vmatprep.subr.bf16.mxu0 0
  %561 = vmatpush1.bf16.msra.mxu0 %v433
  %562 = vmatprep.subr.bf16.mxu0 0
  %563 = vmatpush1.bf16.msra.mxu0 %v432
  %564 = vmatprep.subr.bf16.mxu0 0
  %565 = vmatpush1.bf16.msra.mxu0 %v431
  %566 = vmatprep.subr.bf16.mxu0 0
  %567 = vmatpush1.bf16.msra.mxu0 %v430
  %568 = vmatprep.subr.bf16.mxu0 0
  %569 = vmatpush1.bf16.msra.mxu0 %v429
  %570 = vmatprep.subr.bf16.mxu0 0
  %571 = vmatpush1.bf16.msra.mxu0 %v428
  %572 = vmatprep.subr.bf16.mxu0 0
  %573 = vmatpush2.bf16.msra.mxu0 %v443
  %574 = vmatprep.subr.bf16.mxu0 0
  %575 = vmatpush2.bf16.msra.mxu0 %v442
  %576 = vmatprep.subr.bf16.mxu0 0
  %577 = vmatpush2.bf16.msra.mxu0 %v441
  %578 = vmatprep.subr.bf16.mxu0 0
  %579 = vmatpush2.bf16.msra.mxu0 %v440
  %580 = vmatprep.subr.bf16.mxu0 0
  %581 = vmatpush2.bf16.msra.mxu0 %v439
  %582 = vmatprep.subr.bf16.mxu0 0
  %583 = vmatpush2.bf16.msra.mxu0 %v438
  %584 = vmatprep.subr.bf16.mxu0 0
  %585 = vmatpush2.bf16.msra.mxu0 %v437
  %586 = vmatprep.subr.bf16.mxu0 0
  %587 = vmatpush2.bf16.msra.mxu0 %v436
  %588 = vmatprep.mubr.bf16.mxu0 %v157
  %589 = vmatmul.mubr.bf16.gmra.mxu0 %v156
  %v590 = vpop.f32.mrf.mxu0
  %v591 = vadd.f32 0.0, %v590
  %v592 = vpop.f32.mrf.mxu0
  %v593 = vpop.f32.mrf.mxu0
  %v594 = vpop.f32.mrf.mxu0
  %595 = vdwg.mxu0
  %596 = vmatprep.subr.bf16.mxu0 0
  %597 = vmatpush1.bf16.msra.mxu0 %v451
  %598 = vmatprep.subr.bf16.mxu0 0
  %599 = vmatpush1.bf16.msra.mxu0 %v450
  %600 = vmatprep.subr.bf16.mxu0 0
  %601 = vmatpush1.bf16.msra.mxu0 %v449
  %602 = vmatprep.subr.bf16.mxu0 0
  %603 = vmatpush1.bf16.msra.mxu0 %v448
  %604 = vmatprep.subr.bf16.mxu0 0
  %605 = vmatpush1.bf16.msra.mxu0 %v447
  %606 = vmatprep.subr.bf16.mxu0 0
  %607 = vmatpush1.bf16.msra.mxu0 %v446
  %608 = vmatprep.subr.bf16.mxu0 0
  %609 = vmatpush1.bf16.msra.mxu0 %v445
  %610 = vmatprep.subr.bf16.mxu0 0
  %611 = vmatpush1.bf16.msra.mxu0 %v444
  %612 = vmatprep.subr.bf16.mxu0 0
  %613 = vmatpush2.bf16.msra.mxu0 %v459
  %614 = vmatprep.subr.bf16.mxu0 0
  %615 = vmatpush2.bf16.msra.mxu0 %v458
  %616 = vmatprep.subr.bf16.mxu0 0
  %617 = vmatpush2.bf16.msra.mxu0 %v457
  %618 = vmatprep.subr.bf16.mxu0 0
  %619 = vmatpush2.bf16.msra.mxu0 %v456
  %620 = vmatprep.subr.bf16.mxu0 0
  %621 = vmatpush2.bf16.msra.mxu0 %v455
  %622 = vmatprep.subr.bf16.mxu0 0
  %623 = vmatpush2.bf16.msra.mxu0 %v454
  %624 = vmatprep.subr.bf16.mxu0 0
  %625 = vmatpush2.bf16.msra.mxu0 %v453
  %626 = vmatprep.subr.bf16.mxu0 0
  %627 = vmatpush2.bf16.msra.mxu0 %v452
  %628 = vmatprep.mubr.bf16.mxu0 %v159
  %629 = vmatmul.mubr.bf16.gmra.mxu0 %v158
  %v630 = vpop.f32.mrf.mxu0
  %v631 = vadd.f32 %v591, %v630
  %v632 = vpop.f32.mrf.mxu0
  %v633 = vpop.f32.mrf.mxu0
  %v634 = vpop.f32.mrf.mxu0
  %635 = vdwg.mxu0
  %636 = vmatprep.subr.bf16.mxu0 0
  %637 = vmatpush1.bf16.msra.mxu0 %v467
  %638 = vmatprep.subr.bf16.mxu0 0
  %639 = vmatpush1.bf16.msra.mxu0 %v466
  %640 = vmatprep.subr.bf16.mxu0 0
  %641 = vmatpush1.bf16.msra.mxu0 %v465
  %642 = vmatprep.subr.bf16.mxu0 0
  %643 = vmatpush1.bf16.msra.mxu0 %v464
  %644 = vmatprep.subr.bf16.mxu0 0
  %645 = vmatpush1.bf16.msra.mxu0 %v463
  %646 = vmatprep.subr.bf16.mxu0 0
  %647 = vmatpush1.bf16.msra.mxu0 %v462
  %648 = vmatprep.subr.bf16.mxu0 0
  %649 = vmatpush1.bf16.msra.mxu0 %v461
  %650 = vmatprep.subr.bf16.mxu0 0
  %651 = vmatpush1.bf16.msra.mxu0 %v460
  %652 = vmatprep.subr.bf16.mxu0 0
  %653 = vmatpush2.bf16.msra.mxu0 %v475
  %654 = vmatprep.subr.bf16.mxu0 0
  %655 = vmatpush2.bf16.msra.mxu0 %v474
  %656 = vmatprep.subr.bf16.mxu0 0
  %657 = vmatpush2.bf16.msra.mxu0 %v473
  %658 = vmatprep.subr.bf16.mxu0 0
  %659 = vmatpush2.bf16.msra.mxu0 %v472
  %660 = vmatprep.subr.bf16.mxu0 0
  %661 = vmatpush2.bf16.msra.mxu0 %v471
  %662 = vmatprep.subr.bf16.mxu0 0
  %663 = vmatpush2.bf16.msra.mxu0 %v470
  %664 = vmatprep.subr.bf16.mxu0 0
  %665 = vmatpush2.bf16.msra.mxu0 %v469
  %666 = vmatprep.subr.bf16.mxu0 0
  %667 = vmatpush2.bf16.msra.mxu0 %v468
  %668 = vmatprep.mubr.bf16.mxu0 %v161
  %669 = vmatmul.mubr.bf16.gmra.mxu0 %v160
  %v670 = vpop.f32.mrf.mxu0
  %v671 = vadd.f32 %v631, %v670
  %v672 = vpop.f32.mrf.mxu0
  %v673 = vpop.f32.mrf.mxu0
  %v674 = vpop.f32.mrf.mxu0
  %675 = vdwg.mxu0
  %676 = vmatprep.subr.bf16.mxu0 0
  %677 = vmatpush1.bf16.msra.mxu0 %v483
  %678 = vmatprep.subr.bf16.mxu0 0
  %679 = vmatpush1.bf16.msra.mxu0 %v482
  %680 = vmatprep.subr.bf16.mxu0 0
  %681 = vmatpush1.bf16.msra.mxu0 %v481
  %682 = vmatprep.subr.bf16.mxu0 0
  %683 = vmatpush1.bf16.msra.mxu0 %v480
  %684 = vmatprep.subr.bf16.mxu0 0
  %685 = vmatpush1.bf16.msra.mxu0 %v479
  %686 = vmatprep.subr.bf16.mxu0 0
  %687 = vmatpush1.bf16.msra.mxu0 %v478
  %688 = vmatprep.subr.bf16.mxu0 0
  %689 = vmatpush1.bf16.msra.mxu0 %v477
  %690 = vmatprep.subr.bf16.mxu0 0
  %691 = vmatpush1.bf16.msra.mxu0 %v476
  %692 = vmatprep.subr.bf16.mxu0 0
  %693 = vmatpush2.bf16.msra.mxu0 %v491
  %694 = vmatprep.subr.bf16.mxu0 0
  %695 = vmatpush2.bf16.msra.mxu0 %v490
  %696 = vmatprep.subr.bf16.mxu0 0
  %697 = vmatpush2.bf16.msra.mxu0 %v489
  %698 = vmatprep.subr.bf16.mxu0 0
  %699 = vmatpush2.bf16.msra.mxu0 %v488
  %700 = vmatprep.subr.bf16.mxu0 0
  %701 = vmatpush2.bf16.msra.mxu0 %v487
  %702 = vmatprep.subr.bf16.mxu0 0
  %703 = vmatpush2.bf16.msra.mxu0 %v486
  %704 = vmatprep.subr.bf16.mxu0 0
  %705 = vmatpush2.bf16.msra.mxu0 %v485
  %706 = vmatprep.subr.bf16.mxu0 0
  %707 = vmatpush2.bf16.msra.mxu0 %v484
  %708 = vmatprep.mubr.bf16.mxu0 %v163
  %709 = vmatmul.mubr.bf16.gmra.mxu0 %v162
  %v710 = vpop.f32.mrf.mxu0
  %v711 = vadd.f32 %v671, %v710
  %v712 = vpop.f32.mrf.mxu0
  %v713 = vpop.f32.mrf.mxu0
  %v714 = vpop.f32.mrf.mxu0
  %715 = vdwg.mxu0
  %v716 = vsub.f32 0.0, %v711
  %v717 = vmul.f32 %v716, 1.442695
  %v718 = vpow.pop %v717
  %v719 = vadd.f32 %v718, 1.0
  %v720 = vrcp.pop %v719
  %v721 = vmul.f32 1.0, %v720
  %722 = vst [vmem:[%s2] sm:$0xff] %v721
  // Predicated region
  $region10: #{pix2pix_discriminator.9} parent=0 // pred_check
    _
  $region11: #{pix2pix_discriminator.9} parent=0 // pred_check_branch
    %724 = sbr.rel (0) target = $region13
  $region12: #{pix2pix_discriminator.9} parent=0 // pred_region
    _
  $region13: #{pix2pix_discriminator.9} parent=0 // pred_fallthru
    _
  // Predicated region
  $region14: #{pix2pix_discriminator.9} parent=0 // pred_check
    _
  $region15: #{pix2pix_discriminator.9} parent=0 // pred_check_branch
    %726 = sbr.rel (0) target = $region17
  $region16: #{pix2pix_discriminator.9} parent=0 // pred_region
    _
  $region17: #{pix2pix_discriminator.9} parent=0 // pred_fallthru
    _

</llo_original>
